<compile_context>
chip_gen: v7x
topology: tpu7x:2x2x1
jax: 0.10.0
libtpu: 0.0.40
codegen_flags: <defaults>
</compile_context>

<pallas_src>
import functools

import jax
import jax.numpy as jnp
from jax.experimental import pallas as pl
from jax.experimental.pallas import tpu as pltpu


def _fourier_kernel(x_ref, w_ref, coef_ref, off_ref, o_ref):
    # x_ref:    (TN, 2)  coordinate tile
    # w_ref:    (2, F)   2*pi * projector, columns duplicated (lanes 2k,2k+1 share a phase)
    # coef_ref: (1, F)   per-feature scale (interleaved cos/sin order)
    # off_ref:  (1, F)   phase offset: pi/2 on even lanes (cos), 0 on odd lanes (sin)
    # o_ref:    (TN, F)  output tile
    x0 = x_ref[:, 0:1]                                   # (TN, 1)
    x1 = x_ref[:, 1:2]                                   # (TN, 1)
    # VPU outer product instead of a K=2 MXU matmul (exact f32, no MXU push/pop).
    ang = x0 * w_ref[0:1, :] + (x1 * w_ref[1:2, :] + off_ref[...])
    # One EUP transcendental per lane: cos(t) == sin(t + pi/2).
    o_ref[...] = (jnp.sin(ang) * coef_ref[...]).astype(o_ref.dtype)


@functools.partial(jax.jit, static_argnames=("tile_n", "out_dtype"))
def fourier_encoder(x, projector, coef, *, tile_n=None, out_dtype=jnp.float32):
    """x: (..., 2); projector: (2, P); coef: (1, 2P)  ->  (..., 2P)."""
    orig_shape = x.shape
    assert orig_shape[-1] == 2, "last dim of x must be 2"
    n = 1
    for d in orig_shape[:-1]:
        n *= d
    x2 = x.reshape(n, 2).astype(jnp.float32)

    p = projector.shape[1]
    two_p = 2 * p
    # Lane-dense output invariant: pad the feature dim to a multiple of 128.
    f = max(128, pl.cdiv(two_p, 128) * 128)

    # Glue (tiny constants, computed once outside the kernel):
    # duplicate projector columns and fold 2*pi in.
    w = (2.0 * jnp.pi) * jnp.repeat(projector.astype(jnp.float32), 2, axis=1)  # (2, 2P)
    coef2 = coef.astype(jnp.float32).reshape(1, two_p)
    if f != two_p:
        w = jnp.pad(w, ((0, 0), (0, f - two_p)))
        coef2 = jnp.pad(coef2, ((0, 0), (0, f - two_p)))
    lane = jnp.arange(f)
    offset = jnp.where(lane % 2 == 0,
                       jnp.float32(jnp.pi / 2.0),
                       jnp.float32(0.0)).reshape(1, f)

    # Pick a row tile targeting ~256 KiB f32 output blocks (double-buffered by
    # Pallas); big tiles amortize the ~0.35 us per-step overhead.
    if tile_n is None:
        tile = (256 * 1024) // (f * 4)          # rows per ~256 KiB block
        tile = max(128, min(2048, (tile // 8) * 8))
    else:
        tile = tile_n
    # Keep >= 2 grid steps when possible so the "parallel" axis can shard
    # across v7x's two TensorCores.
    while tile > 128 and pl.cdiv(n, tile) < 2:
        tile //= 2
    tile = max(8, tile)

    grid = (pl.cdiv(n, tile),)

    # VMEM footprint at tile=512, F=128: out 256 KiB + inputs ~6 KiB (x2 for
    # double-buffering) — far under scoped defaults on v5e/v6e/v7x.
    out = pl.pallas_call(
        _fourier_kernel,
        out_shape=jax.ShapeDtypeStruct((n, f), out_dtype),
        grid_spec=pltpu.PrefetchScalarGridSpec(
            num_scalar_prefetch=0,
            grid=grid,
            in_specs=[
                pl.BlockSpec((tile, 2), lambda i: (i, 0)),
                pl.BlockSpec((2, f), lambda i: (0, 0)),
                pl.BlockSpec((1, f), lambda i: (0, 0)),
                pl.BlockSpec((1, f), lambda i: (0, 0)),
            ],
            out_specs=pl.BlockSpec((tile, f), lambda i: (i, 0)),
        ),
        compiler_params=pltpu.CompilerParams(
            dimension_semantics=("parallel",)
        ),
    )(x2, w, coef2, offset)

    if f != two_p:
        out = out[:, :two_p]
    return out.reshape(*orig_shape[:-1], two_p)


def fourier_encoder_ref(x, projector, coef):
    """Pure-JAX reference mirroring the PyTorch forward (exact f32 projection)."""
    proj = projector.astype(jnp.float32)
    xp = jnp.matmul(x.astype(jnp.float32), proj,
                    precision=jax.lax.Precision.HIGHEST)   # (..., P)
    ang = 2.0 * jnp.pi * xp
    inter = jnp.stack([jnp.cos(ang), jnp.sin(ang)], axis=-1)   # (..., P, 2)
    inter = inter.reshape(*inter.shape[:-2], -1)               # (..., 2P) interleaved
    return inter * coef.reshape(1, -1)


if __name__ == "__main__":
    key = jax.random.PRNGKey(0)
    k_x, k_proj, k_x2 = jax.random.split(key, 3)

    # Case 1: module defaults — 2P = 128 (already lane-dense), N = 256.
    num_phases = 64
    init_scale = 10.0
    batch, seq = 2, 128
    x = jax.random.uniform(k_x, (batch, seq, 2), dtype=jnp.float32)
    projector = init_scale * jax.random.normal(
        k_proj, (2, num_phases), dtype=jnp.float32
    )
    coef = jnp.ones((1, num_phases * 2), dtype=jnp.float32)

    out = jax.block_until_ready(fourier_encoder(x, projector, coef))
    ref = fourier_encoder_ref(x, projector, coef)
    assert out.shape == (batch, seq, 2 * num_phases), out.shape
    assert jnp.allclose(out, ref, atol=2e-3, rtol=2e-3), float(
        jnp.max(jnp.abs(out - ref))
    )

    # Case 2: ragged N (150) and 2P = 80 (not a multiple of 128) — exercises
    # the padded feature columns and the masked boundary row-tile.
    num_phases2 = 40
    x_b = jax.random.uniform(k_x2, (3, 50, 2), dtype=jnp.float32)
    projector2 = 4.0 * jax.random.normal(
        k_proj, (2, num_phases2), dtype=jnp.float32
    )
    coef_b = jnp.full((1, num_phases2 * 2), 0.5, dtype=jnp.float32)

    out2 = jax.block_until_ready(fourier_encoder(x_b, projector2, coef_b))
    ref2 = fourier_encoder_ref(x_b, projector2, coef_b)
    assert out2.shape == (3, 50, 2 * num_phases2), out2.shape
    assert jnp.allclose(out2, ref2, atol=2e-3, rtol=2e-3), float(
        jnp.max(jnp.abs(out2 - ref2))
    )

    print("KERNEL_OK")
</pallas_src>

<mosaic_0001>
module attributes {stable_mosaic.version = 11 : i64} {
  func.func @_fourier_kernel(%arg0: i32, %arg1: memref<128x2xf32, #tpu.memory_space<vmem>>, %arg2: memref<2x128xf32, #tpu.memory_space<vmem>>, %arg3: memref<1x128xf32, #tpu.memory_space<vmem>>, %arg4: memref<1x128xf32, #tpu.memory_space<vmem>>, %arg5: memref<128x128xf32, #tpu.memory_space<vmem>>) attributes {dimension_semantics = [#tpu.dimension_semantics<parallel>], iteration_bounds = array<i64: 2>, scalar_prefetch = 0 : i64, scratch_operands = 0 : i64, tpu.core_type = #tpu.core_type<tc>, window_params = [{transform_indices = @transform_0, window_bounds = array<i64: 128, 2>}, {pipeline_mode = #tpu.pipeline_mode<synchronous>, transform_indices = @transform_1, window_bounds = array<i64: 2, 128>}, {pipeline_mode = #tpu.pipeline_mode<synchronous>, transform_indices = @transform_2, window_bounds = array<i64: 1, 128>}, {pipeline_mode = #tpu.pipeline_mode<synchronous>, transform_indices = @transform_3, window_bounds = array<i64: 1, 128>}, {transform_indices = @transform_4, window_bounds = array<i64: 128, 128>}]} {
    %c0 = arith.constant 0 : index
    %c0_0 = arith.constant 0 : index
    %0 = vector.load %arg1[%c0, %c0_0] : memref<128x2xf32, #tpu.memory_space<vmem>>, vector<128x1xf32>
    %c0_1 = arith.constant 0 : index
    %c1 = arith.constant 1 : index
    %1 = vector.load %arg1[%c0_1, %c1] : memref<128x2xf32, #tpu.memory_space<vmem>>, vector<128x1xf32>
    %c0_2 = arith.constant 0 : index
    %c0_3 = arith.constant 0 : index
    %2 = vector.load %arg2[%c0_2, %c0_3] : memref<2x128xf32, #tpu.memory_space<vmem>>, vector<1x128xf32>
    %3 = vector.broadcast %0 : vector<128x1xf32> to vector<128x128xf32>
    %4 = vector.broadcast %2 : vector<1x128xf32> to vector<128x128xf32>
    %5 = arith.mulf %3, %4 : vector<128x128xf32>
    %c1_4 = arith.constant 1 : index
    %c0_5 = arith.constant 0 : index
    %6 = vector.load %arg2[%c1_4, %c0_5] : memref<2x128xf32, #tpu.memory_space<vmem>>, vector<1x128xf32>
    %7 = vector.broadcast %1 : vector<128x1xf32> to vector<128x128xf32>
    %8 = vector.broadcast %6 : vector<1x128xf32> to vector<128x128xf32>
    %9 = arith.mulf %7, %8 : vector<128x128xf32>
    %c0_6 = arith.constant 0 : index
    %c0_7 = arith.constant 0 : index
    %10 = vector.load %arg4[%c0_6, %c0_7] : memref<1x128xf32, #tpu.memory_space<vmem>>, vector<1x128xf32>
    %11 = vector.broadcast %10 : vector<1x128xf32> to vector<128x128xf32>
    %12 = arith.addf %9, %11 : vector<128x128xf32>
    %13 = arith.addf %5, %12 : vector<128x128xf32>
    %14 = math.sin %13 : vector<128x128xf32>
    %c0_8 = arith.constant 0 : index
    %c0_9 = arith.constant 0 : index
    %15 = vector.load %arg3[%c0_8, %c0_9] : memref<1x128xf32, #tpu.memory_space<vmem>>, vector<1x128xf32>
    %16 = vector.broadcast %15 : vector<1x128xf32> to vector<128x128xf32>
    %17 = arith.mulf %14, %16 : vector<128x128xf32>
    %c0_10 = arith.constant 0 : index
    %c0_11 = arith.constant 0 : index
    %18 = vector.load %arg5[%c0_10, %c0_11] : memref<128x128xf32, #tpu.memory_space<vmem>>, vector<128x128xf32>
    tpu.vector_store %arg5[%c0_10, %c0_11], %17 {strides = array<i32>} : memref<128x128xf32, #tpu.memory_space<vmem>>, vector<128x128xf32>,
    return
  }
  func.func @transform_0(%arg0: i32) -> (i32, i32) {
    %c0_i32 = arith.constant 0 : i32
    %c0_i32_0 = arith.constant 0 : i32
    return %arg0, %c0_i32 : i32, i32
  }
  func.func @transform_1(%arg0: i32) -> (i32, i32) {
    %c0_i32 = arith.constant 0 : i32
    %c0_i32_0 = arith.constant 0 : i32
    %c0_i32_1 = arith.constant 0 : i32
    return %c0_i32, %c0_i32_0 : i32, i32
  }
  func.func @transform_2(%arg0: i32) -> (i32, i32) {
    %c0_i32 = arith.constant 0 : i32
    %c0_i32_0 = arith.constant 0 : i32
    %c0_i32_1 = arith.constant 0 : i32
    return %c0_i32, %c0_i32_0 : i32, i32
  }
  func.func @transform_3(%arg0: i32) -> (i32, i32) {
    %c0_i32 = arith.constant 0 : i32
    %c0_i32_0 = arith.constant 0 : i32
    %c0_i32_1 = arith.constant 0 : i32
    return %c0_i32, %c0_i32_0 : i32, i32
  }
  func.func @transform_4(%arg0: i32) -> (i32, i32) {
    %c0_i32 = arith.constant 0 : i32
    %c0_i32_0 = arith.constant 0 : i32
    return %arg0, %c0_i32 : i32, i32
  }
}

</mosaic_0001>

<llo_original>
// kernel: fourier_encoder.1
$region0: #{fourier_encoder.1}
  #allocation0 [shape = 'u32[]', space=smem, size = 0x4, offset = 0x4, fixed_abs, tag = 'smem constant byte address 0x4 - core index']
  #allocation1 [shape = 'u32[144,128]{1,0:T(1,128)}', space=vmem, size = 0x12000, scoped, tag = 'internal scratch']
  %s0 = inlined_call_operand.vmem [shape: f32[256,2], index: 0, kind: input, shape index: {}]
  %s1 = inlined_call_operand.vmem [shape: f32[2,128], index: 1, kind: input, shape index: {}]
  %s2 = inlined_call_operand.vmem [shape: f32[1,128], index: 2, kind: input, shape index: {}]
  %s3 = inlined_call_operand.vmem [shape: f32[1,128], index: 3, kind: input, shape index: {}]
  %s4 = inlined_call_operand.hbm [shape: f32[256,128], index: 4, kind: output, shape index: {}]
  %s5 = sld [smem:[#allocation0]]
  $region49: #{fourier_encoder.1} parent=0
    _
  %s7 = ssub.s32 1, %s5
  %s8 = scalar_select 0, %s7, %s5
  $region1: #{fourier_encoder.1} parent=0
    #allocation2 [shape = 'u8[131072]{0}', space=vmem, size = 0x20000, scoped, tag = 'output window, operand 0']
    #allocation3 [shape = 's32[2]{0}', space=sflag, size = 0x8, scoped, tag = 'scoped memory for fourier_encoder.1']
    %9 = vsyncpa [#allocation3], 0
    %s10 = scalar_lea.sflag [#allocation3], 1
    %11 = vsyncpa %s10, 0
    loop: start=0, step=1, limit=4
    $region2: #{fourier_encoder.1} parent=1 // loop_pre_header
      _
    $region3: #{fourier_encoder.1} parent=1 // loop_header
      %s13 = sphi 0, %s17
      %p14 = scmp.ge.s32.totalorder %s13, 4
      %s23 = sphi 0, %s25
      %s26 = sphi 0, %s23
      %s27 = sphi 0, %s26
      %s43 = sphi 0, %s27
      %s47 = sphi 0, %s47
      %s49 = sphi 0, %s47
      %s50 = sphi 0, %s49
      %s64 = sphi 0, %s50
      %s68 = sphi 0, %s68
      %s70 = sphi 0, %s68
      %s71 = sphi 0, %s70
      %s85 = sphi 0, %s71
      %s89 = sphi 0, %s89
      %s91 = sphi 0, %s89
      %s92 = sphi 0, %s91
      %s106 = sphi 0, %s92
      %s112 = sphi 0, %s114
      %s115 = sphi 0, %s112
      %s116 = sphi 0, %s115
      %s132 = sphi 0, %s116
    $region4: #{fourier_encoder.1} parent=1 // loop_header_branch
      %16 = sbr.rel (%p14) target = $region8
    $region5: #{fourier_encoder.1} parent=1 // loop_body
      %s18 = ssub.s32 %s13, 1
      %s19 = ssub.s32 %s13, 2
      %s20 = sadd.s32 %s13, 1
      %s21 = ssub.s32 %s13, %s20
      %p22 = scmp.eq.s32.totalorder %s21, 0
      %s24 = sadd.s32 %s23, 1
      %s25 = scalar_select %p22, %s23, %s24
      %p28 = pneg %p22
      %p29 = scmp.eq.s32.totalorder %s13, 1
      %p30 = por %p28, %p29
      %p31 = scmp.ne.s32.totalorder %s23, %s26
      %p32 = scmp.eq.s32.totalorder %s13, 0
      %p33 = por %p31, %p32
      %p34 = scmp.ne.s32.totalorder %s23, %s26
      %p35 = scmp.eq.s32.totalorder %s18, 1
      %p36 = por %p34, %p35
      %p37 = scmp.ne.s32.totalorder %s26, %s27
      %p38 = scmp.eq.s32.totalorder %s18, 0
      %p39 = por %p37, %p38
      %p40 = scmp.ne.s32.totalorder %s26, %s27
      %p41 = scmp.eq.s32.totalorder %s19, 1
      %p42 = por %p40, %p41
      %p44 = scmp.ne.s32.totalorder %s27, %s43
      %p45 = scmp.eq.s32.totalorder %s19, 0
      %p46 = por %p44, %p45
      %s48 = sadd.s32 %s47, 1
      %p51 = scmp.eq.s32.totalorder %s13, 1
      %p52 = scmp.ne.s32.totalorder %s47, %s49
      %p53 = scmp.eq.s32.totalorder %s13, 0
      %p54 = por %p52, %p53
      %p55 = scmp.ne.s32.totalorder %s47, %s49
      %p56 = scmp.eq.s32.totalorder %s18, 1
      %p57 = por %p55, %p56
      %p58 = scmp.ne.s32.totalorder %s49, %s50
      %p59 = scmp.eq.s32.totalorder %s18, 0
      %p60 = por %p58, %p59
      %p61 = scmp.ne.s32.totalorder %s49, %s50
      %p62 = scmp.eq.s32.totalorder %s19, 1
      %p63 = por %p61, %p62
      %p65 = scmp.ne.s32.totalorder %s50, %s64
      %p66 = scmp.eq.s32.totalorder %s19, 0
      %p67 = por %p65, %p66
      %s69 = sadd.s32 %s68, 1
      %p72 = scmp.eq.s32.totalorder %s13, 1
      %p73 = scmp.ne.s32.totalorder %s68, %s70
      %p74 = scmp.eq.s32.totalorder %s13, 0
      %p75 = por %p73, %p74
      %p76 = scmp.ne.s32.totalorder %s68, %s70
      %p77 = scmp.eq.s32.totalorder %s18, 1
      %p78 = por %p76, %p77
      %p79 = scmp.ne.s32.totalorder %s70, %s71
      %p80 = scmp.eq.s32.totalorder %s18, 0
      %p81 = por %p79, %p80
      %p82 = scmp.ne.s32.totalorder %s70, %s71
      %p83 = scmp.eq.s32.totalorder %s19, 1
      %p84 = por %p82, %p83
      %p86 = scmp.ne.s32.totalorder %s71, %s85
      %p87 = scmp.eq.s32.totalorder %s19, 0
      %p88 = por %p86, %p87
      %s90 = sadd.s32 %s89, 1
      %p93 = scmp.eq.s32.totalorder %s13, 1
      %p94 = scmp.ne.s32.totalorder %s89, %s91
      %p95 = scmp.eq.s32.totalorder %s13, 0
      %p96 = por %p94, %p95
      %p97 = scmp.ne.s32.totalorder %s89, %s91
      %p98 = scmp.eq.s32.totalorder %s18, 1
      %p99 = por %p97, %p98
      %p100 = scmp.ne.s32.totalorder %s91, %s92
      %p101 = scmp.eq.s32.totalorder %s18, 0
      %p102 = por %p100, %p101
      %p103 = scmp.ne.s32.totalorder %s91, %s92
      %p104 = scmp.eq.s32.totalorder %s19, 1
      %p105 = por %p103, %p104
      %p107 = scmp.ne.s32.totalorder %s92, %s106
      %p108 = scmp.eq.s32.totalorder %s19, 0
      %p109 = por %p107, %p108
      %s110 = ssub.s32 %s13, %s20
      %p111 = scmp.eq.s32.totalorder %s110, 0
      %s113 = sadd.s32 %s112, 1
      %s114 = scalar_select %p111, %s112, %s113
      %p117 = pneg %p111
      %p118 = scmp.eq.s32.totalorder %s13, 1
      %p119 = por %p117, %p118
      %p120 = scmp.ne.s32.totalorder %s112, %s115
      %p121 = scmp.eq.s32.totalorder %s13, 0
      %p122 = por %p120, %p121
      %p123 = scmp.ne.s32.totalorder %s112, %s115
      %p124 = scmp.eq.s32.totalorder %s18, 1
      %p125 = por %p123, %p124
      %p126 = scmp.ne.s32.totalorder %s115, %s116
      %p127 = scmp.eq.s32.totalorder %s18, 0
      %p128 = por %p126, %p127
      %p129 = scmp.ne.s32.totalorder %s115, %s116
      %p130 = scmp.eq.s32.totalorder %s19, 1
      %p131 = por %p129, %p130
      %p133 = scmp.ne.s32.totalorder %s116, %s132
      %p134 = scmp.eq.s32.totalorder %s19, 0
      %p135 = por %p133, %p134
      %p136 = scmp.le.s32.totalorder 1, %s13
      %p137 = scmp.lt.s32.totalorder %s13, 3
      %p138 = pnand %p136, %p137
      %p139 = pneg %p138
      // Predicated region
      $region9: #{fourier_encoder.1} parent=5 // pred_check
        _
      $region10: #{fourier_encoder.1} parent=5 // pred_check_branch
        %141 = sbr.rel (%p138) target = $region12
      $region11: #{fourier_encoder.1} parent=5 // pred_region
        %s142 = ssub.s32 %s13, 1
        // Predicated region
        $region13: #{fourier_encoder.1} parent=11 // pred_check
          %p143 = pneg %p60
        $region14: #{fourier_encoder.1} parent=11 // pred_check_branch
          %145 = sbr.rel (%p143) target = $region16
        $region15: #{fourier_encoder.1} parent=11 // pred_region
          _
        $region16: #{fourier_encoder.1} parent=11 // pred_fallthru
          _
        // Predicated region
        $region17: #{fourier_encoder.1} parent=11 // pred_check
          %p146 = pneg %p81
        $region18: #{fourier_encoder.1} parent=11 // pred_check_branch
          %148 = sbr.rel (%p146) target = $region20
        $region19: #{fourier_encoder.1} parent=11 // pred_region
          _
        $region20: #{fourier_encoder.1} parent=11 // pred_fallthru
          _
        // Predicated region
        $region21: #{fourier_encoder.1} parent=11 // pred_check
          %p149 = pneg %p102
        $region22: #{fourier_encoder.1} parent=11 // pred_check_branch
          %151 = sbr.rel (%p149) target = $region24
        $region23: #{fourier_encoder.1} parent=11 // pred_region
          _
        $region24: #{fourier_encoder.1} parent=11 // pred_fallthru
          _
      $region12: #{fourier_encoder.1} parent=5 // pred_fallthru
        _
      %p152 = scmp.lt.s32.totalorder %s13, 2
      // Predicated region
      $region25: #{fourier_encoder.1} parent=5 // pred_check
        %p153 = pneg %p152
      $region26: #{fourier_encoder.1} parent=5 // pred_check_branch
        %155 = sbr.rel (%p153) target = $region28
      $region27: #{fourier_encoder.1} parent=5 // pred_region
        // Predicated region
        $region29: #{fourier_encoder.1} parent=27 // pred_check
          %p156 = pneg %p33
        $region30: #{fourier_encoder.1} parent=27 // pred_check_branch
          %158 = sbr.rel (%p156) target = $region32
        $region31: #{fourier_encoder.1} parent=27 // pred_region
          %s159 = smul.u32 16, %s13
          %p160 = scmp.lt.s32.totalorder %s159, 31
          %s161 = scalar_select %p160, %s159, 31
          %s162 = smul.addr %s161, 8
          %s163 = scalar_lea.vmem %s0, %s162
          %s164 = smul.u32 16, %s13
        $region32: #{fourier_encoder.1} parent=27 // pred_fallthru
          _
      $region28: #{fourier_encoder.1} parent=5 // pred_fallthru
        _
      %p165 = scmp.le.s32.totalorder 1, %s13
      %p166 = scmp.lt.s32.totalorder %s13, 3
      %p167 = pnand %p165, %p166
      %p168 = pneg %p167
      // Predicated region
      $region33: #{fourier_encoder.1} parent=5 // pred_check
        _
      $region34: #{fourier_encoder.1} parent=5 // pred_check_branch
        %170 = sbr.rel (%p167) target = $region36
      $region35: #{fourier_encoder.1} parent=5 // pred_region
        %s171 = ssub.s32 %s13, 1
        %s172 = smul.u32 16, %s18
        %p173 = scmp.lt.s32.totalorder %s172, 31
        %s174 = scalar_select %p173, %s172, 31
        %s175 = smul.addr %s174, 8
        %s176 = scalar_lea.vmem %s0, %s175
        %p177 = pneg %p39
        %p178 = pneg %p36
        %p179 = pneg %p60
        %p180 = pneg %p57
        %p181 = pneg %p81
        %p182 = pneg %p78
        %p183 = pneg %p102
        %p184 = pneg %p99
        %p185 = pneg %p128
        %p186 = pneg %p125
        %s187 = sand.u32 %s115, 1
        %s188 = scalar_lea.sflag [#allocation3], %s187
        %s189 = sand.u32 %s115, 1
        %s190 = smul.addr %s189, 128
        %s191 = scalar_lea.vmem [#allocation2], %s190
        %s192 = smul.u32 16, %s18
        %p193 = scmp.lt.s32.totalorder %s192, 31
        %s194 = scalar_select %p193, %s192, 31
        %s195 = smul.addr %s194, 8
        %s196 = scalar_lea.vmem %s0, %s195
        %s197 = smul.u32 16, %s18
        %s198 = smul.u32 16, %s18
        %v199 = vld [vmem:[%s196] sm:$0xff]
        %v200 = vld [vmem:[%s196 + $0x8] sm:$0xff]
        %v201 = vld [vmem:[%s196 + $0x10] sm:$0xff]
        %v202 = vld [vmem:[%s196 + $0x18] sm:$0xff]
        %v203 = vld [vmem:[%s196 + $0x20] sm:$0xff]
        %v204 = vld [vmem:[%s196 + $0x28] sm:$0xff]
        %v205 = vld [vmem:[%s196 + $0x30] sm:$0xff]
        %v206 = vld [vmem:[%s196 + $0x38] sm:$0xff]
        %v207 = vld [vmem:[%s196 + $0x40] sm:$0xff]
        %v208 = vld [vmem:[%s196 + $0x48] sm:$0xff]
        %v209 = vld [vmem:[%s196 + $0x50] sm:$0xff]
        %v210 = vld [vmem:[%s196 + $0x58] sm:$0xff]
        %v211 = vld [vmem:[%s196 + $0x60] sm:$0xff]
        %v212 = vld [vmem:[%s196 + $0x68] sm:$0xff]
        %v213 = vld [vmem:[%s196 + $0x70] sm:$0xff]
        %v214 = vld [vmem:[%s196 + $0x78] sm:$0xff]
        %v215 = vld [vmem:[%s1] sm:$0x1]
        %217 = vset.pattern.permute.xlu0 0
        %218 = vperm.xlu0 %217, %v199
        %v219 = vpop.permute.xlu0 %218
        %222 = vset.pattern.permute.xlu0 0
        %223 = vperm.xlu0 %222, %v200
        %v224 = vpop.permute.xlu0 %223
        %227 = vset.pattern.permute.xlu0 0
        %228 = vperm.xlu0 %227, %v201
        %v229 = vpop.permute.xlu0 %228
        %232 = vset.pattern.permute.xlu0 0
        %233 = vperm.xlu0 %232, %v202
        %v234 = vpop.permute.xlu0 %233
        %237 = vset.pattern.permute.xlu0 0
        %238 = vperm.xlu0 %237, %v203
        %v239 = vpop.permute.xlu0 %238
        %242 = vset.pattern.permute.xlu0 0
        %243 = vperm.xlu0 %242, %v204
        %v244 = vpop.permute.xlu0 %243
        %247 = vset.pattern.permute.xlu0 0
        %248 = vperm.xlu0 %247, %v205
        %v249 = vpop.permute.xlu0 %248
        %252 = vset.pattern.permute.xlu0 0
        %253 = vperm.xlu0 %252, %v206
        %v254 = vpop.permute.xlu0 %253
        %257 = vset.pattern.permute.xlu0 0
        %258 = vperm.xlu0 %257, %v207
        %v259 = vpop.permute.xlu0 %258
        %262 = vset.pattern.permute.xlu0 0
        %263 = vperm.xlu0 %262, %v208
        %v264 = vpop.permute.xlu0 %263
        %267 = vset.pattern.permute.xlu0 0
        %268 = vperm.xlu0 %267, %v209
        %v269 = vpop.permute.xlu0 %268
        %272 = vset.pattern.permute.xlu0 0
        %273 = vperm.xlu0 %272, %v210
        %v274 = vpop.permute.xlu0 %273
        %277 = vset.pattern.permute.xlu0 0
        %278 = vperm.xlu0 %277, %v211
        %v279 = vpop.permute.xlu0 %278
        %282 = vset.pattern.permute.xlu0 0
        %283 = vperm.xlu0 %282, %v212
        %v284 = vpop.permute.xlu0 %283
        %287 = vset.pattern.permute.xlu0 0
        %288 = vperm.xlu0 %287, %v213
        %v289 = vpop.permute.xlu0 %288
        %292 = vset.pattern.permute.xlu0 0
        %293 = vperm.xlu0 %292, %v214
        %v294 = vpop.permute.xlu0 %293
        %v296 = vlaneseq
        %v297 = vshrl.u32 %v296, 7
        %v298 = vsub.s32 0, %v297
        %v299 = vrot.slane %v215, %v298
        %v300 = vmul.f32 %v219, %v299
        %v301 = vmul.f32 %v224, %v299
        %v302 = vmul.f32 %v229, %v299
        %v303 = vmul.f32 %v234, %v299
        %v304 = vmul.f32 %v239, %v299
        %v305 = vmul.f32 %v244, %v299
        %v306 = vmul.f32 %v249, %v299
        %v307 = vmul.f32 %v254, %v299
        %v308 = vmul.f32 %v259, %v299
        %v309 = vmul.f32 %v264, %v299
        %v310 = vmul.f32 %v269, %v299
        %v311 = vmul.f32 %v274, %v299
        %v312 = vmul.f32 %v279, %v299
        %v313 = vmul.f32 %v284, %v299
        %v314 = vmul.f32 %v289, %v299
        %v315 = vmul.f32 %v294, %v299
        %v316 = vld [vmem:[%s1 + $0x1] sm:$0x1]
        %317 = vset.pattern.permute.xlu0 1
        %318 = vperm.xlu0 %317, %v199
        %v319 = vpop.permute.xlu0 %318
        %321 = vset.pattern.permute.xlu0 1
        %322 = vperm.xlu0 %321, %v200
        %v323 = vpop.permute.xlu0 %322
        %325 = vset.pattern.permute.xlu0 1
        %326 = vperm.xlu0 %325, %v201
        %v327 = vpop.permute.xlu0 %326
        %329 = vset.pattern.permute.xlu0 1
        %330 = vperm.xlu0 %329, %v202
        %v331 = vpop.permute.xlu0 %330
        %333 = vset.pattern.permute.xlu0 1
        %334 = vperm.xlu0 %333, %v203
        %v335 = vpop.permute.xlu0 %334
        %337 = vset.pattern.permute.xlu0 1
        %338 = vperm.xlu0 %337, %v204
        %v339 = vpop.permute.xlu0 %338
        %341 = vset.pattern.permute.xlu0 1
        %342 = vperm.xlu0 %341, %v205
        %v343 = vpop.permute.xlu0 %342
        %345 = vset.pattern.permute.xlu0 1
        %346 = vperm.xlu0 %345, %v206
        %v347 = vpop.permute.xlu0 %346
        %349 = vset.pattern.permute.xlu0 1
        %350 = vperm.xlu0 %349, %v207
        %v351 = vpop.permute.xlu0 %350
        %353 = vset.pattern.permute.xlu0 1
        %354 = vperm.xlu0 %353, %v208
        %v355 = vpop.permute.xlu0 %354
        %357 = vset.pattern.permute.xlu0 1
        %358 = vperm.xlu0 %357, %v209
        %v359 = vpop.permute.xlu0 %358
        %361 = vset.pattern.permute.xlu0 1
        %362 = vperm.xlu0 %361, %v210
        %v363 = vpop.permute.xlu0 %362
        %365 = vset.pattern.permute.xlu0 1
        %366 = vperm.xlu0 %365, %v211
        %v367 = vpop.permute.xlu0 %366
        %369 = vset.pattern.permute.xlu0 1
        %370 = vperm.xlu0 %369, %v212
        %v371 = vpop.permute.xlu0 %370
        %373 = vset.pattern.permute.xlu0 1
        %374 = vperm.xlu0 %373, %v213
        %v375 = vpop.permute.xlu0 %374
        %377 = vset.pattern.permute.xlu0 1
        %378 = vperm.xlu0 %377, %v214
        %v379 = vpop.permute.xlu0 %378
        %v381 = vlaneseq
        %v382 = vshrl.u32 %v381, 7
        %v383 = vsub.s32 0, %v382
        %v384 = vrot.slane %v316, %v383
        %v385 = vmul.f32 %v319, %v384
        %v386 = vmul.f32 %v323, %v384
        %v387 = vmul.f32 %v327, %v384
        %v388 = vmul.f32 %v331, %v384
        %v389 = vmul.f32 %v335, %v384
        %v390 = vmul.f32 %v339, %v384
        %v391 = vmul.f32 %v343, %v384
        %v392 = vmul.f32 %v347, %v384
        %v393 = vmul.f32 %v351, %v384
        %v394 = vmul.f32 %v355, %v384
        %v395 = vmul.f32 %v359, %v384
        %v396 = vmul.f32 %v363, %v384
        %v397 = vmul.f32 %v367, %v384
        %v398 = vmul.f32 %v371, %v384
        %v399 = vmul.f32 %v375, %v384
        %v400 = vmul.f32 %v379, %v384
        %v401 = vld [vmem:[%s3] sm:$0x1]
        %v403 = vlaneseq
        %v404 = vshrl.u32 %v403, 7
        %v405 = vsub.s32 0, %v404
        %v406 = vrot.slane %v401, %v405
        %v408 = vadd.f32 %v385, %v406
        %v409 = vadd.f32 %v386, %v406
        %v410 = vadd.f32 %v387, %v406
        %v411 = vadd.f32 %v388, %v406
        %v412 = vadd.f32 %v389, %v406
        %v413 = vadd.f32 %v390, %v406
        %v414 = vadd.f32 %v391, %v406
        %v415 = vadd.f32 %v392, %v406
        %v416 = vadd.f32 %v393, %v406
        %v417 = vadd.f32 %v394, %v406
        %v418 = vadd.f32 %v395, %v406
        %v419 = vadd.f32 %v396, %v406
        %v420 = vadd.f32 %v397, %v406
        %v421 = vadd.f32 %v398, %v406
        %v422 = vadd.f32 %v399, %v406
        %v423 = vadd.f32 %v400, %v406
        %v424 = vadd.f32 %v300, %v408
        %v425 = vadd.f32 %v301, %v409
        %v426 = vadd.f32 %v302, %v410
        %v427 = vadd.f32 %v303, %v411
        %v428 = vadd.f32 %v304, %v412
        %v429 = vadd.f32 %v305, %v413
        %v430 = vadd.f32 %v306, %v414
        %v431 = vadd.f32 %v307, %v415
        %v432 = vadd.f32 %v308, %v416
        %v433 = vadd.f32 %v309, %v417
        %v434 = vadd.f32 %v310, %v418
        %v435 = vadd.f32 %v311, %v419
        %v436 = vadd.f32 %v312, %v420
        %v437 = vadd.f32 %v313, %v421
        %v438 = vadd.f32 %v314, %v422
        %v439 = vadd.f32 %v315, %v423
        %v440 = vand.u32 2147483647, %v424
        %vm441 = vcmp.le.f32.partialorder %v440, 0.7853982
        %vm442 = vcmp.lt.s32.totalorder %v424, 0
        %v443 = vand.u32 %v424, 2139095040
        %v444 = vshrl.u32 %v443, 23
        %v445 = vsub.s32 %v444, 127
        %v446 = vand.u32 2147483647, %v424
        %v447 = vand.u32 %v446, 8388607
        %v448 = vor.u32 %v447, 8388608
        %v449 = vsub.s32 0, %v448
        %v450 = vadd.s32 %v445, 1
        %vm451 = vcmp.gt.s32.totalorder %v450, 0
        %v452 = vsel %vm451, %v450, 0
        %v453 = vshrl.u32 %v452, 5
        %v454 = vand.u32 %v452, 31
        %v455 = vsub.s32 32, %v454
        %v456 = vshrl.u32 683565275, %v455
        %v457 = vshll.u32 683565275, %v454
        %v458 = vshrl.u32 2475754826, %v455
        %v459 = vor.u32 %v457, %v458
        %v460 = vshll.u32 2475754826, %v454
        %v461 = vshrl.u32 2131351028, %v455
        %v462 = vor.u32 %v460, %v461
        %v463 = vshll.u32 2131351028, %v454
        %v464 = vshrl.u32 2102212464, %v455
        %v465 = vor.u32 %v463, %v464
        %v466 = vshll.u32 2102212464, %v454
        %v467 = vshrl.u32 920167782, %v455
        %v468 = vor.u32 %v466, %v467
        %v469 = vshll.u32 920167782, %v454
        %v470 = vshrl.u32 1326507024, %v455
        %v471 = vor.u32 %v469, %v470
        %vm472 = vcmp.lt.s32.totalorder %v453, 1
        %vm473 = vcmp.lt.s32.totalorder %v453, 2
        %vm474 = vcmp.lt.s32.totalorder %v453, 3
        %vm475 = vcmp.lt.s32.totalorder %v453, 4
        %v476 = vsel %vm472, %v456, %v459
        %v477 = vsel %vm475, %v465, 2102212464
        %v478 = vsel %vm474, %v462, %v477
        %v479 = vsel %vm473, %v476, %v478
        %v480 = vsel %vm472, %v459, %v462
        %v481 = vsel %vm475, %v468, 920167782
        %v482 = vsel %vm474, %v465, %v481
        %v483 = vsel %vm473, %v480, %v482
        %v484 = vsel %vm472, %v462, %v465
        %v485 = vsel %vm475, %v471, 1326507024
        %v486 = vsel %vm474, %v468, %v485
        %v487 = vsel %vm473, %v484, %v486
        %v488 = vshll.u32 %v448, 8
        %v489 = vmul.u32.u64.compose %v488, %v487
        %v490 = vextract.low.u32 %v489
        %v491 = vextract.high.u32 %v489
        %v492 = vmul.u32.u64.compose %v488, %v483
        %v493 = vextract.low.u32 %v492
        %v494 = vextract.high.u32 %v492
        %v495 = vmul.u32 %v488, %v479
        %v496 = vadd.s32 %v491, %v493
        %vm497 = vc.u32 %v491, %v493
        %v498 = vadd.s32 %v494, 1
        %v499 = vsel %vm497, %v498, %v494
        %v500 = vadd.s32 %v495, %v499
        %v501 = vadd.s32 %v500, 536870912
        %v502 = vshrl.u32 %v501, 30
        %v503 = vshll.u32 %v502, 30
        %v504 = vsub.s32 %v500, %v503
        %vm505 = vcmp.lt.s32.totalorder %v504, 0
        %v506 = vsub.s32 0, %v504
        %v507 = vsel %vm505, %v506, %v504
        %v508 = vclz %v507
        %v509 = vsub.s32 %v508, 2
        %vm510 = vcmp.gt.s32.totalorder 0, %v509
        %v511 = vsel %vm510, 0, %v509
        %v512 = vsub.s32 32, %v511
        %v513 = vshll.u32 %v504, %v511
        %v514 = vshrl.u32 %v496, %v512
        %v515 = vor.u32 %v513, %v514
        %v516 = vsub.s32 4294967266, %v511
        %v517 = vadd.s32 %v516, 127
        %v518 = vshll.u32 %v517, 23
        %v519 = vor.u32 4788187, %v518
        %v520 = vand.u32 2147483647, %v519
        %v522 = vcvt.s32.f32 %v515
        %v523 = vmul.f32 %v522, %v520
        %v524 = vxor.u32 %v523, 2147483648
        %v525 = vsel %vm442, %v524, %v523
        %v526 = vsub.s32 4, %v502
        %v527 = vsel %vm442, %v526, %v502
        %v528 = vsel %vm441, %v424, %v525
        %v529 = vsel %vm441, 0, %v527
        %v530 = vcosq.f32.pop %v528
        %v531 = vsinq.f32.pop %v528
        %vm532 = vweird.f32 %v424
        %v533 = vadd.s32 %v529, 3
        %v534 = vand.u32 %v533, 3
        %vm535 = vcmp.lt.s32.totalorder %v534, 2
        %vm536 = vcmp.eq.s32.totalorder %v534, 0
        %v537 = vxor.u32 %v531, 2147483648
        %v538 = vsel %vm536, %v530, %v537
        %vm539 = vcmp.eq.s32.totalorder %v534, 2
        %v540 = vxor.u32 %v530, 2147483648
        %v541 = vsel %vm539, %v540, %v531
        %v542 = vsel %vm535, %v538, %v541
        %v543 = vsel %vm532, nan, %v542
        %v544 = vand.u32 2147483647, %v425
        %vm545 = vcmp.le.f32.partialorder %v544, 0.7853982
        %vm546 = vcmp.lt.s32.totalorder %v425, 0
        %v547 = vand.u32 %v425, 2139095040
        %v548 = vshrl.u32 %v547, 23
        %v549 = vsub.s32 %v548, 127
        %v550 = vand.u32 2147483647, %v425
        %v551 = vand.u32 %v550, 8388607
        %v552 = vor.u32 %v551, 8388608
        %v553 = vsub.s32 0, %v552
        %v554 = vadd.s32 %v549, 1
        %vm555 = vcmp.gt.s32.totalorder %v554, 0
        %v556 = vsel %vm555, %v554, 0
        %v557 = vshrl.u32 %v556, 5
        %v558 = vand.u32 %v556, 31
        %v559 = vsub.s32 32, %v558
        %v560 = vshrl.u32 683565275, %v559
        %v561 = vshll.u32 683565275, %v558
        %v562 = vshrl.u32 2475754826, %v559
        %v563 = vor.u32 %v561, %v562
        %v564 = vshll.u32 2475754826, %v558
        %v565 = vshrl.u32 2131351028, %v559
        %v566 = vor.u32 %v564, %v565
        %v567 = vshll.u32 2131351028, %v558
        %v568 = vshrl.u32 2102212464, %v559
        %v569 = vor.u32 %v567, %v568
        %v570 = vshll.u32 2102212464, %v558
        %v571 = vshrl.u32 920167782, %v559
        %v572 = vor.u32 %v570, %v571
        %v573 = vshll.u32 920167782, %v558
        %v574 = vshrl.u32 1326507024, %v559
        %v575 = vor.u32 %v573, %v574
        %vm576 = vcmp.lt.s32.totalorder %v557, 1
        %vm577 = vcmp.lt.s32.totalorder %v557, 2
        %vm578 = vcmp.lt.s32.totalorder %v557, 3
        %vm579 = vcmp.lt.s32.totalorder %v557, 4
        %v580 = vsel %vm576, %v560, %v563
        %v581 = vsel %vm579, %v569, 2102212464
        %v582 = vsel %vm578, %v566, %v581
        %v583 = vsel %vm577, %v580, %v582
        %v584 = vsel %vm576, %v563, %v566
        %v585 = vsel %vm579, %v572, 920167782
        %v586 = vsel %vm578, %v569, %v585
        %v587 = vsel %vm577, %v584, %v586
        %v588 = vsel %vm576, %v566, %v569
        %v589 = vsel %vm579, %v575, 1326507024
        %v590 = vsel %vm578, %v572, %v589
        %v591 = vsel %vm577, %v588, %v590
        %v592 = vshll.u32 %v552, 8
        %v593 = vmul.u32.u64.compose %v592, %v591
        %v594 = vextract.low.u32 %v593
        %v595 = vextract.high.u32 %v593
        %v596 = vmul.u32.u64.compose %v592, %v587
        %v597 = vextract.low.u32 %v596
        %v598 = vextract.high.u32 %v596
        %v599 = vmul.u32 %v592, %v583
        %v600 = vadd.s32 %v595, %v597
        %vm601 = vc.u32 %v595, %v597
        %v602 = vadd.s32 %v598, 1
        %v603 = vsel %vm601, %v602, %v598
        %v604 = vadd.s32 %v599, %v603
        %v605 = vadd.s32 %v604, 536870912
        %v606 = vshrl.u32 %v605, 30
        %v607 = vshll.u32 %v606, 30
        %v608 = vsub.s32 %v604, %v607
        %vm609 = vcmp.lt.s32.totalorder %v608, 0
        %v610 = vsub.s32 0, %v608
        %v611 = vsel %vm609, %v610, %v608
        %v612 = vclz %v611
        %v613 = vsub.s32 %v612, 2
        %vm614 = vcmp.gt.s32.totalorder 0, %v613
        %v615 = vsel %vm614, 0, %v613
        %v616 = vsub.s32 32, %v615
        %v617 = vshll.u32 %v608, %v615
        %v618 = vshrl.u32 %v600, %v616
        %v619 = vor.u32 %v617, %v618
        %v620 = vsub.s32 4294967266, %v615
        %v621 = vadd.s32 %v620, 127
        %v622 = vshll.u32 %v621, 23
        %v623 = vor.u32 4788187, %v622
        %v624 = vand.u32 2147483647, %v623
        %v626 = vcvt.s32.f32 %v619
        %v627 = vmul.f32 %v626, %v624
        %v628 = vxor.u32 %v627, 2147483648
        %v629 = vsel %vm546, %v628, %v627
        %v630 = vsub.s32 4, %v606
        %v631 = vsel %vm546, %v630, %v606
        %v632 = vsel %vm545, %v425, %v629
        %v633 = vsel %vm545, 0, %v631
        %v634 = vcosq.f32.pop %v632
        %v635 = vsinq.f32.pop %v632
        %vm636 = vweird.f32 %v425
        %v637 = vadd.s32 %v633, 3
        %v638 = vand.u32 %v637, 3
        %vm639 = vcmp.lt.s32.totalorder %v638, 2
        %vm640 = vcmp.eq.s32.totalorder %v638, 0
        %v641 = vxor.u32 %v635, 2147483648
        %v642 = vsel %vm640, %v634, %v641
        %vm643 = vcmp.eq.s32.totalorder %v638, 2
        %v644 = vxor.u32 %v634, 2147483648
        %v645 = vsel %vm643, %v644, %v635
        %v646 = vsel %vm639, %v642, %v645
        %v647 = vsel %vm636, nan, %v646
        %v648 = vand.u32 2147483647, %v426
        %vm649 = vcmp.le.f32.partialorder %v648, 0.7853982
        %vm650 = vcmp.lt.s32.totalorder %v426, 0
        %v651 = vand.u32 %v426, 2139095040
        %v652 = vshrl.u32 %v651, 23
        %v653 = vsub.s32 %v652, 127
        %v654 = vand.u32 2147483647, %v426
        %v655 = vand.u32 %v654, 8388607
        %v656 = vor.u32 %v655, 8388608
        %v657 = vsub.s32 0, %v656
        %v658 = vadd.s32 %v653, 1
        %vm659 = vcmp.gt.s32.totalorder %v658, 0
        %v660 = vsel %vm659, %v658, 0
        %v661 = vshrl.u32 %v660, 5
        %v662 = vand.u32 %v660, 31
        %v663 = vsub.s32 32, %v662
        %v664 = vshrl.u32 683565275, %v663
        %v665 = vshll.u32 683565275, %v662
        %v666 = vshrl.u32 2475754826, %v663
        %v667 = vor.u32 %v665, %v666
        %v668 = vshll.u32 2475754826, %v662
        %v669 = vshrl.u32 2131351028, %v663
        %v670 = vor.u32 %v668, %v669
        %v671 = vshll.u32 2131351028, %v662
        %v672 = vshrl.u32 2102212464, %v663
        %v673 = vor.u32 %v671, %v672
        %v674 = vshll.u32 2102212464, %v662
        %v675 = vshrl.u32 920167782, %v663
        %v676 = vor.u32 %v674, %v675
        %v677 = vshll.u32 920167782, %v662
        %v678 = vshrl.u32 1326507024, %v663
        %v679 = vor.u32 %v677, %v678
        %vm680 = vcmp.lt.s32.totalorder %v661, 1
        %vm681 = vcmp.lt.s32.totalorder %v661, 2
        %vm682 = vcmp.lt.s32.totalorder %v661, 3
        %vm683 = vcmp.lt.s32.totalorder %v661, 4
        %v684 = vsel %vm680, %v664, %v667
        %v685 = vsel %vm683, %v673, 2102212464
        %v686 = vsel %vm682, %v670, %v685
        %v687 = vsel %vm681, %v684, %v686
        %v688 = vsel %vm680, %v667, %v670
        %v689 = vsel %vm683, %v676, 920167782
        %v690 = vsel %vm682, %v673, %v689
        %v691 = vsel %vm681, %v688, %v690
        %v692 = vsel %vm680, %v670, %v673
        %v693 = vsel %vm683, %v679, 1326507024
        %v694 = vsel %vm682, %v676, %v693
        %v695 = vsel %vm681, %v692, %v694
        %v696 = vshll.u32 %v656, 8
        %v697 = vmul.u32.u64.compose %v696, %v695
        %v698 = vextract.low.u32 %v697
        %v699 = vextract.high.u32 %v697
        %v700 = vmul.u32.u64.compose %v696, %v691
        %v701 = vextract.low.u32 %v700
        %v702 = vextract.high.u32 %v700
        %v703 = vmul.u32 %v696, %v687
        %v704 = vadd.s32 %v699, %v701
        %vm705 = vc.u32 %v699, %v701
        %v706 = vadd.s32 %v702, 1
        %v707 = vsel %vm705, %v706, %v702
        %v708 = vadd.s32 %v703, %v707
        %v709 = vadd.s32 %v708, 536870912
        %v710 = vshrl.u32 %v709, 30
        %v711 = vshll.u32 %v710, 30
        %v712 = vsub.s32 %v708, %v711
        %vm713 = vcmp.lt.s32.totalorder %v712, 0
        %v714 = vsub.s32 0, %v712
        %v715 = vsel %vm713, %v714, %v712
        %v716 = vclz %v715
        %v717 = vsub.s32 %v716, 2
        %vm718 = vcmp.gt.s32.totalorder 0, %v717
        %v719 = vsel %vm718, 0, %v717
        %v720 = vsub.s32 32, %v719
        %v721 = vshll.u32 %v712, %v719
        %v722 = vshrl.u32 %v704, %v720
        %v723 = vor.u32 %v721, %v722
        %v724 = vsub.s32 4294967266, %v719
        %v725 = vadd.s32 %v724, 127
        %v726 = vshll.u32 %v725, 23
        %v727 = vor.u32 4788187, %v726
        %v728 = vand.u32 2147483647, %v727
        %v730 = vcvt.s32.f32 %v723
        %v731 = vmul.f32 %v730, %v728
        %v732 = vxor.u32 %v731, 2147483648
        %v733 = vsel %vm650, %v732, %v731
        %v734 = vsub.s32 4, %v710
        %v735 = vsel %vm650, %v734, %v710
        %v736 = vsel %vm649, %v426, %v733
        %v737 = vsel %vm649, 0, %v735
        %v738 = vcosq.f32.pop %v736
        %v739 = vsinq.f32.pop %v736
        %vm740 = vweird.f32 %v426
        %v741 = vadd.s32 %v737, 3
        %v742 = vand.u32 %v741, 3
        %vm743 = vcmp.lt.s32.totalorder %v742, 2
        %vm744 = vcmp.eq.s32.totalorder %v742, 0
        %v745 = vxor.u32 %v739, 2147483648
        %v746 = vsel %vm744, %v738, %v745
        %vm747 = vcmp.eq.s32.totalorder %v742, 2
        %v748 = vxor.u32 %v738, 2147483648
        %v749 = vsel %vm747, %v748, %v739
        %v750 = vsel %vm743, %v746, %v749
        %v751 = vsel %vm740, nan, %v750
        %v752 = vand.u32 2147483647, %v427
        %vm753 = vcmp.le.f32.partialorder %v752, 0.7853982
        %vm754 = vcmp.lt.s32.totalorder %v427, 0
        %v755 = vand.u32 %v427, 2139095040
        %v756 = vshrl.u32 %v755, 23
        %v757 = vsub.s32 %v756, 127
        %v758 = vand.u32 2147483647, %v427
        %v759 = vand.u32 %v758, 8388607
        %v760 = vor.u32 %v759, 8388608
        %v761 = vsub.s32 0, %v760
        %v762 = vadd.s32 %v757, 1
        %vm763 = vcmp.gt.s32.totalorder %v762, 0
        %v764 = vsel %vm763, %v762, 0
        %v765 = vshrl.u32 %v764, 5
        %v766 = vand.u32 %v764, 31
        %v767 = vsub.s32 32, %v766
        %v768 = vshrl.u32 683565275, %v767
        %v769 = vshll.u32 683565275, %v766
        %v770 = vshrl.u32 2475754826, %v767
        %v771 = vor.u32 %v769, %v770
        %v772 = vshll.u32 2475754826, %v766
        %v773 = vshrl.u32 2131351028, %v767
        %v774 = vor.u32 %v772, %v773
        %v775 = vshll.u32 2131351028, %v766
        %v776 = vshrl.u32 2102212464, %v767
        %v777 = vor.u32 %v775, %v776
        %v778 = vshll.u32 2102212464, %v766
        %v779 = vshrl.u32 920167782, %v767
        %v780 = vor.u32 %v778, %v779
        %v781 = vshll.u32 920167782, %v766
        %v782 = vshrl.u32 1326507024, %v767
        %v783 = vor.u32 %v781, %v782
        %vm784 = vcmp.lt.s32.totalorder %v765, 1
        %vm785 = vcmp.lt.s32.totalorder %v765, 2
        %vm786 = vcmp.lt.s32.totalorder %v765, 3
        %vm787 = vcmp.lt.s32.totalorder %v765, 4
        %v788 = vsel %vm784, %v768, %v771
        %v789 = vsel %vm787, %v777, 2102212464
        %v790 = vsel %vm786, %v774, %v789
        %v791 = vsel %vm785, %v788, %v790
        %v792 = vsel %vm784, %v771, %v774
        %v793 = vsel %vm787, %v780, 920167782
        %v794 = vsel %vm786, %v777, %v793
        %v795 = vsel %vm785, %v792, %v794
        %v796 = vsel %vm784, %v774, %v777
        %v797 = vsel %vm787, %v783, 1326507024
        %v798 = vsel %vm786, %v780, %v797
        %v799 = vsel %vm785, %v796, %v798
        %v800 = vshll.u32 %v760, 8
        %v801 = vmul.u32.u64.compose %v800, %v799
        %v802 = vextract.low.u32 %v801
        %v803 = vextract.high.u32 %v801
        %v804 = vmul.u32.u64.compose %v800, %v795
        %v805 = vextract.low.u32 %v804
        %v806 = vextract.high.u32 %v804
        %v807 = vmul.u32 %v800, %v791
        %v808 = vadd.s32 %v803, %v805
        %vm809 = vc.u32 %v803, %v805
        %v810 = vadd.s32 %v806, 1
        %v811 = vsel %vm809, %v810, %v806
        %v812 = vadd.s32 %v807, %v811
        %v813 = vadd.s32 %v812, 536870912
        %v814 = vshrl.u32 %v813, 30
        %v815 = vshll.u32 %v814, 30
        %v816 = vsub.s32 %v812, %v815
        %vm817 = vcmp.lt.s32.totalorder %v816, 0
        %v818 = vsub.s32 0, %v816
        %v819 = vsel %vm817, %v818, %v816
        %v820 = vclz %v819
        %v821 = vsub.s32 %v820, 2
        %vm822 = vcmp.gt.s32.totalorder 0, %v821
        %v823 = vsel %vm822, 0, %v821
        %v824 = vsub.s32 32, %v823
        %v825 = vshll.u32 %v816, %v823
        %v826 = vshrl.u32 %v808, %v824
        %v827 = vor.u32 %v825, %v826
        %v828 = vsub.s32 4294967266, %v823
        %v829 = vadd.s32 %v828, 127
        %v830 = vshll.u32 %v829, 23
        %v831 = vor.u32 4788187, %v830
        %v832 = vand.u32 2147483647, %v831
        %v834 = vcvt.s32.f32 %v827
        %v835 = vmul.f32 %v834, %v832
        %v836 = vxor.u32 %v835, 2147483648
        %v837 = vsel %vm754, %v836, %v835
        %v838 = vsub.s32 4, %v814
        %v839 = vsel %vm754, %v838, %v814
        %v840 = vsel %vm753, %v427, %v837
        %v841 = vsel %vm753, 0, %v839
        %v842 = vcosq.f32.pop %v840
        %v843 = vsinq.f32.pop %v840
        %vm844 = vweird.f32 %v427
        %v845 = vadd.s32 %v841, 3
        %v846 = vand.u32 %v845, 3
        %vm847 = vcmp.lt.s32.totalorder %v846, 2
        %vm848 = vcmp.eq.s32.totalorder %v846, 0
        %v849 = vxor.u32 %v843, 2147483648
        %v850 = vsel %vm848, %v842, %v849
        %vm851 = vcmp.eq.s32.totalorder %v846, 2
        %v852 = vxor.u32 %v842, 2147483648
        %v853 = vsel %vm851, %v852, %v843
        %v854 = vsel %vm847, %v850, %v853
        %v855 = vsel %vm844, nan, %v854
        %v856 = vand.u32 2147483647, %v428
        %vm857 = vcmp.le.f32.partialorder %v856, 0.7853982
        %vm858 = vcmp.lt.s32.totalorder %v428, 0
        %v859 = vand.u32 %v428, 2139095040
        %v860 = vshrl.u32 %v859, 23
        %v861 = vsub.s32 %v860, 127
        %v862 = vand.u32 2147483647, %v428
        %v863 = vand.u32 %v862, 8388607
        %v864 = vor.u32 %v863, 8388608
        %v865 = vsub.s32 0, %v864
        %v866 = vadd.s32 %v861, 1
        %vm867 = vcmp.gt.s32.totalorder %v866, 0
        %v868 = vsel %vm867, %v866, 0
        %v869 = vshrl.u32 %v868, 5
        %v870 = vand.u32 %v868, 31
        %v871 = vsub.s32 32, %v870
        %v872 = vshrl.u32 683565275, %v871
        %v873 = vshll.u32 683565275, %v870
        %v874 = vshrl.u32 2475754826, %v871
        %v875 = vor.u32 %v873, %v874
        %v876 = vshll.u32 2475754826, %v870
        %v877 = vshrl.u32 2131351028, %v871
        %v878 = vor.u32 %v876, %v877
        %v879 = vshll.u32 2131351028, %v870
        %v880 = vshrl.u32 2102212464, %v871
        %v881 = vor.u32 %v879, %v880
        %v882 = vshll.u32 2102212464, %v870
        %v883 = vshrl.u32 920167782, %v871
        %v884 = vor.u32 %v882, %v883
        %v885 = vshll.u32 920167782, %v870
        %v886 = vshrl.u32 1326507024, %v871
        %v887 = vor.u32 %v885, %v886
        %vm888 = vcmp.lt.s32.totalorder %v869, 1
        %vm889 = vcmp.lt.s32.totalorder %v869, 2
        %vm890 = vcmp.lt.s32.totalorder %v869, 3
        %vm891 = vcmp.lt.s32.totalorder %v869, 4
        %v892 = vsel %vm888, %v872, %v875
        %v893 = vsel %vm891, %v881, 2102212464
        %v894 = vsel %vm890, %v878, %v893
        %v895 = vsel %vm889, %v892, %v894
        %v896 = vsel %vm888, %v875, %v878
        %v897 = vsel %vm891, %v884, 920167782
        %v898 = vsel %vm890, %v881, %v897
        %v899 = vsel %vm889, %v896, %v898
        %v900 = vsel %vm888, %v878, %v881
        %v901 = vsel %vm891, %v887, 1326507024
        %v902 = vsel %vm890, %v884, %v901
        %v903 = vsel %vm889, %v900, %v902
        %v904 = vshll.u32 %v864, 8
        %v905 = vmul.u32.u64.compose %v904, %v903
        %v906 = vextract.low.u32 %v905
        %v907 = vextract.high.u32 %v905
        %v908 = vmul.u32.u64.compose %v904, %v899
        %v909 = vextract.low.u32 %v908
        %v910 = vextract.high.u32 %v908
        %v911 = vmul.u32 %v904, %v895
        %v912 = vadd.s32 %v907, %v909
        %vm913 = vc.u32 %v907, %v909
        %v914 = vadd.s32 %v910, 1
        %v915 = vsel %vm913, %v914, %v910
        %v916 = vadd.s32 %v911, %v915
        %v917 = vadd.s32 %v916, 536870912
        %v918 = vshrl.u32 %v917, 30
        %v919 = vshll.u32 %v918, 30
        %v920 = vsub.s32 %v916, %v919
        %vm921 = vcmp.lt.s32.totalorder %v920, 0
        %v922 = vsub.s32 0, %v920
        %v923 = vsel %vm921, %v922, %v920
        %v924 = vclz %v923
        %v925 = vsub.s32 %v924, 2
        %vm926 = vcmp.gt.s32.totalorder 0, %v925
        %v927 = vsel %vm926, 0, %v925
        %v928 = vsub.s32 32, %v927
        %v929 = vshll.u32 %v920, %v927
        %v930 = vshrl.u32 %v912, %v928
        %v931 = vor.u32 %v929, %v930
        %v932 = vsub.s32 4294967266, %v927
        %v933 = vadd.s32 %v932, 127
        %v934 = vshll.u32 %v933, 23
        %v935 = vor.u32 4788187, %v934
        %v936 = vand.u32 2147483647, %v935
        %v938 = vcvt.s32.f32 %v931
        %v939 = vmul.f32 %v938, %v936
        %v940 = vxor.u32 %v939, 2147483648
        %v941 = vsel %vm858, %v940, %v939
        %v942 = vsub.s32 4, %v918
        %v943 = vsel %vm858, %v942, %v918
        %v944 = vsel %vm857, %v428, %v941
        %v945 = vsel %vm857, 0, %v943
        %v946 = vcosq.f32.pop %v944
        %v947 = vsinq.f32.pop %v944
        %vm948 = vweird.f32 %v428
        %v949 = vadd.s32 %v945, 3
        %v950 = vand.u32 %v949, 3
        %vm951 = vcmp.lt.s32.totalorder %v950, 2
        %vm952 = vcmp.eq.s32.totalorder %v950, 0
        %v953 = vxor.u32 %v947, 2147483648
        %v954 = vsel %vm952, %v946, %v953
        %vm955 = vcmp.eq.s32.totalorder %v950, 2
        %v956 = vxor.u32 %v946, 2147483648
        %v957 = vsel %vm955, %v956, %v947
        %v958 = vsel %vm951, %v954, %v957
        %v959 = vsel %vm948, nan, %v958
        %v960 = vand.u32 2147483647, %v429
        %vm961 = vcmp.le.f32.partialorder %v960, 0.7853982
        %vm962 = vcmp.lt.s32.totalorder %v429, 0
        %v963 = vand.u32 %v429, 2139095040
        %v964 = vshrl.u32 %v963, 23
        %v965 = vsub.s32 %v964, 127
        %v966 = vand.u32 2147483647, %v429
        %v967 = vand.u32 %v966, 8388607
        %v968 = vor.u32 %v967, 8388608
        %v969 = vsub.s32 0, %v968
        %v970 = vadd.s32 %v965, 1
        %vm971 = vcmp.gt.s32.totalorder %v970, 0
        %v972 = vsel %vm971, %v970, 0
        %v973 = vshrl.u32 %v972, 5
        %v974 = vand.u32 %v972, 31
        %v975 = vsub.s32 32, %v974
        %v976 = vshrl.u32 683565275, %v975
        %v977 = vshll.u32 683565275, %v974
        %v978 = vshrl.u32 2475754826, %v975
        %v979 = vor.u32 %v977, %v978
        %v980 = vshll.u32 2475754826, %v974
        %v981 = vshrl.u32 2131351028, %v975
        %v982 = vor.u32 %v980, %v981
        %v983 = vshll.u32 2131351028, %v974
        %v984 = vshrl.u32 2102212464, %v975
        %v985 = vor.u32 %v983, %v984
        %v986 = vshll.u32 2102212464, %v974
        %v987 = vshrl.u32 920167782, %v975
        %v988 = vor.u32 %v986, %v987
        %v989 = vshll.u32 920167782, %v974
        %v990 = vshrl.u32 1326507024, %v975
        %v991 = vor.u32 %v989, %v990
        %vm992 = vcmp.lt.s32.totalorder %v973, 1
        %vm993 = vcmp.lt.s32.totalorder %v973, 2
        %vm994 = vcmp.lt.s32.totalorder %v973, 3
        %vm995 = vcmp.lt.s32.totalorder %v973, 4
        %v996 = vsel %vm992, %v976, %v979
        %v997 = vsel %vm995, %v985, 2102212464
        %v998 = vsel %vm994, %v982, %v997
        %v999 = vsel %vm993, %v996, %v998
        %v1000 = vsel %vm992, %v979, %v982
        %v1001 = vsel %vm995, %v988, 920167782
        %v1002 = vsel %vm994, %v985, %v1001
        %v1003 = vsel %vm993, %v1000, %v1002
        %v1004 = vsel %vm992, %v982, %v985
        %v1005 = vsel %vm995, %v991, 1326507024
        %v1006 = vsel %vm994, %v988, %v1005
        %v1007 = vsel %vm993, %v1004, %v1006
        %v1008 = vshll.u32 %v968, 8
        %v1009 = vmul.u32.u64.compose %v1008, %v1007
        %v1010 = vextract.low.u32 %v1009
        %v1011 = vextract.high.u32 %v1009
        %v1012 = vmul.u32.u64.compose %v1008, %v1003
        %v1013 = vextract.low.u32 %v1012
        %v1014 = vextract.high.u32 %v1012
        %v1015 = vmul.u32 %v1008, %v999
        %v1016 = vadd.s32 %v1011, %v1013
        %vm1017 = vc.u32 %v1011, %v1013
        %v1018 = vadd.s32 %v1014, 1
        %v1019 = vsel %vm1017, %v1018, %v1014
        %v1020 = vadd.s32 %v1015, %v1019
        %v1021 = vadd.s32 %v1020, 536870912
        %v1022 = vshrl.u32 %v1021, 30
        %v1023 = vshll.u32 %v1022, 30
        %v1024 = vsub.s32 %v1020, %v1023
        %vm1025 = vcmp.lt.s32.totalorder %v1024, 0
        %v1026 = vsub.s32 0, %v1024
        %v1027 = vsel %vm1025, %v1026, %v1024
        %v1028 = vclz %v1027
        %v1029 = vsub.s32 %v1028, 2
        %vm1030 = vcmp.gt.s32.totalorder 0, %v1029
        %v1031 = vsel %vm1030, 0, %v1029
        %v1032 = vsub.s32 32, %v1031
        %v1033 = vshll.u32 %v1024, %v1031
        %v1034 = vshrl.u32 %v1016, %v1032
        %v1035 = vor.u32 %v1033, %v1034
        %v1036 = vsub.s32 4294967266, %v1031
        %v1037 = vadd.s32 %v1036, 127
        %v1038 = vshll.u32 %v1037, 23
        %v1039 = vor.u32 4788187, %v1038
        %v1040 = vand.u32 2147483647, %v1039
        %v1042 = vcvt.s32.f32 %v1035
        %v1043 = vmul.f32 %v1042, %v1040
        %v1044 = vxor.u32 %v1043, 2147483648
        %v1045 = vsel %vm962, %v1044, %v1043
        %v1046 = vsub.s32 4, %v1022
        %v1047 = vsel %vm962, %v1046, %v1022
        %v1048 = vsel %vm961, %v429, %v1045
        %v1049 = vsel %vm961, 0, %v1047
        %v1050 = vcosq.f32.pop %v1048
        %v1051 = vsinq.f32.pop %v1048
        %vm1052 = vweird.f32 %v429
        %v1053 = vadd.s32 %v1049, 3
        %v1054 = vand.u32 %v1053, 3
        %vm1055 = vcmp.lt.s32.totalorder %v1054, 2
        %vm1056 = vcmp.eq.s32.totalorder %v1054, 0
        %v1057 = vxor.u32 %v1051, 2147483648
        %v1058 = vsel %vm1056, %v1050, %v1057
        %vm1059 = vcmp.eq.s32.totalorder %v1054, 2
        %v1060 = vxor.u32 %v1050, 2147483648
        %v1061 = vsel %vm1059, %v1060, %v1051
        %v1062 = vsel %vm1055, %v1058, %v1061
        %v1063 = vsel %vm1052, nan, %v1062
        %v1064 = vand.u32 2147483647, %v430
        %vm1065 = vcmp.le.f32.partialorder %v1064, 0.7853982
        %vm1066 = vcmp.lt.s32.totalorder %v430, 0
        %v1067 = vand.u32 %v430, 2139095040
        %v1068 = vshrl.u32 %v1067, 23
        %v1069 = vsub.s32 %v1068, 127
        %v1070 = vand.u32 2147483647, %v430
        %v1071 = vand.u32 %v1070, 8388607
        %v1072 = vor.u32 %v1071, 8388608
        %v1073 = vsub.s32 0, %v1072
        %v1074 = vadd.s32 %v1069, 1
        %vm1075 = vcmp.gt.s32.totalorder %v1074, 0
        %v1076 = vsel %vm1075, %v1074, 0
        %v1077 = vshrl.u32 %v1076, 5
        %v1078 = vand.u32 %v1076, 31
        %v1079 = vsub.s32 32, %v1078
        %v1080 = vshrl.u32 683565275, %v1079
        %v1081 = vshll.u32 683565275, %v1078
        %v1082 = vshrl.u32 2475754826, %v1079
        %v1083 = vor.u32 %v1081, %v1082
        %v1084 = vshll.u32 2475754826, %v1078
        %v1085 = vshrl.u32 2131351028, %v1079
        %v1086 = vor.u32 %v1084, %v1085
        %v1087 = vshll.u32 2131351028, %v1078
        %v1088 = vshrl.u32 2102212464, %v1079
        %v1089 = vor.u32 %v1087, %v1088
        %v1090 = vshll.u32 2102212464, %v1078
        %v1091 = vshrl.u32 920167782, %v1079
        %v1092 = vor.u32 %v1090, %v1091
        %v1093 = vshll.u32 920167782, %v1078
        %v1094 = vshrl.u32 1326507024, %v1079
        %v1095 = vor.u32 %v1093, %v1094
        %vm1096 = vcmp.lt.s32.totalorder %v1077, 1
        %vm1097 = vcmp.lt.s32.totalorder %v1077, 2
        %vm1098 = vcmp.lt.s32.totalorder %v1077, 3
        %vm1099 = vcmp.lt.s32.totalorder %v1077, 4
        %v1100 = vsel %vm1096, %v1080, %v1083
        %v1101 = vsel %vm1099, %v1089, 2102212464
        %v1102 = vsel %vm1098, %v1086, %v1101
        %v1103 = vsel %vm1097, %v1100, %v1102
        %v1104 = vsel %vm1096, %v1083, %v1086
        %v1105 = vsel %vm1099, %v1092, 920167782
        %v1106 = vsel %vm1098, %v1089, %v1105
        %v1107 = vsel %vm1097, %v1104, %v1106
        %v1108 = vsel %vm1096, %v1086, %v1089
        %v1109 = vsel %vm1099, %v1095, 1326507024
        %v1110 = vsel %vm1098, %v1092, %v1109
        %v1111 = vsel %vm1097, %v1108, %v1110
        %v1112 = vshll.u32 %v1072, 8
        %v1113 = vmul.u32.u64.compose %v1112, %v1111
        %v1114 = vextract.low.u32 %v1113
        %v1115 = vextract.high.u32 %v1113
        %v1116 = vmul.u32.u64.compose %v1112, %v1107
        %v1117 = vextract.low.u32 %v1116
        %v1118 = vextract.high.u32 %v1116
        %v1119 = vmul.u32 %v1112, %v1103
        %v1120 = vadd.s32 %v1115, %v1117
        %vm1121 = vc.u32 %v1115, %v1117
        %v1122 = vadd.s32 %v1118, 1
        %v1123 = vsel %vm1121, %v1122, %v1118
        %v1124 = vadd.s32 %v1119, %v1123
        %v1125 = vadd.s32 %v1124, 536870912
        %v1126 = vshrl.u32 %v1125, 30
        %v1127 = vshll.u32 %v1126, 30
        %v1128 = vsub.s32 %v1124, %v1127
        %vm1129 = vcmp.lt.s32.totalorder %v1128, 0
        %v1130 = vsub.s32 0, %v1128
        %v1131 = vsel %vm1129, %v1130, %v1128
        %v1132 = vclz %v1131
        %v1133 = vsub.s32 %v1132, 2
        %vm1134 = vcmp.gt.s32.totalorder 0, %v1133
        %v1135 = vsel %vm1134, 0, %v1133
        %v1136 = vsub.s32 32, %v1135
        %v1137 = vshll.u32 %v1128, %v1135
        %v1138 = vshrl.u32 %v1120, %v1136
        %v1139 = vor.u32 %v1137, %v1138
        %v1140 = vsub.s32 4294967266, %v1135
        %v1141 = vadd.s32 %v1140, 127
        %v1142 = vshll.u32 %v1141, 23
        %v1143 = vor.u32 4788187, %v1142
        %v1144 = vand.u32 2147483647, %v1143
        %v1146 = vcvt.s32.f32 %v1139
        %v1147 = vmul.f32 %v1146, %v1144
        %v1148 = vxor.u32 %v1147, 2147483648
        %v1149 = vsel %vm1066, %v1148, %v1147
        %v1150 = vsub.s32 4, %v1126
        %v1151 = vsel %vm1066, %v1150, %v1126
        %v1152 = vsel %vm1065, %v430, %v1149
        %v1153 = vsel %vm1065, 0, %v1151
        %v1154 = vcosq.f32.pop %v1152
        %v1155 = vsinq.f32.pop %v1152
        %vm1156 = vweird.f32 %v430
        %v1157 = vadd.s32 %v1153, 3
        %v1158 = vand.u32 %v1157, 3
        %vm1159 = vcmp.lt.s32.totalorder %v1158, 2
        %vm1160 = vcmp.eq.s32.totalorder %v1158, 0
        %v1161 = vxor.u32 %v1155, 2147483648
        %v1162 = vsel %vm1160, %v1154, %v1161
        %vm1163 = vcmp.eq.s32.totalorder %v1158, 2
        %v1164 = vxor.u32 %v1154, 2147483648
        %v1165 = vsel %vm1163, %v1164, %v1155
        %v1166 = vsel %vm1159, %v1162, %v1165
        %v1167 = vsel %vm1156, nan, %v1166
        %v1168 = vand.u32 2147483647, %v431
        %vm1169 = vcmp.le.f32.partialorder %v1168, 0.7853982
        %vm1170 = vcmp.lt.s32.totalorder %v431, 0
        %v1171 = vand.u32 %v431, 2139095040
        %v1172 = vshrl.u32 %v1171, 23
        %v1173 = vsub.s32 %v1172, 127
        %v1174 = vand.u32 2147483647, %v431
        %v1175 = vand.u32 %v1174, 8388607
        %v1176 = vor.u32 %v1175, 8388608
        %v1177 = vsub.s32 0, %v1176
        %v1178 = vadd.s32 %v1173, 1
        %vm1179 = vcmp.gt.s32.totalorder %v1178, 0
        %v1180 = vsel %vm1179, %v1178, 0
        %v1181 = vshrl.u32 %v1180, 5
        %v1182 = vand.u32 %v1180, 31
        %v1183 = vsub.s32 32, %v1182
        %v1184 = vshrl.u32 683565275, %v1183
        %v1185 = vshll.u32 683565275, %v1182
        %v1186 = vshrl.u32 2475754826, %v1183
        %v1187 = vor.u32 %v1185, %v1186
        %v1188 = vshll.u32 2475754826, %v1182
        %v1189 = vshrl.u32 2131351028, %v1183
        %v1190 = vor.u32 %v1188, %v1189
        %v1191 = vshll.u32 2131351028, %v1182
        %v1192 = vshrl.u32 2102212464, %v1183
        %v1193 = vor.u32 %v1191, %v1192
        %v1194 = vshll.u32 2102212464, %v1182
        %v1195 = vshrl.u32 920167782, %v1183
        %v1196 = vor.u32 %v1194, %v1195
        %v1197 = vshll.u32 920167782, %v1182
        %v1198 = vshrl.u32 1326507024, %v1183
        %v1199 = vor.u32 %v1197, %v1198
        %vm1200 = vcmp.lt.s32.totalorder %v1181, 1
        %vm1201 = vcmp.lt.s32.totalorder %v1181, 2
        %vm1202 = vcmp.lt.s32.totalorder %v1181, 3
        %vm1203 = vcmp.lt.s32.totalorder %v1181, 4
        %v1204 = vsel %vm1200, %v1184, %v1187
        %v1205 = vsel %vm1203, %v1193, 2102212464
        %v1206 = vsel %vm1202, %v1190, %v1205
        %v1207 = vsel %vm1201, %v1204, %v1206
        %v1208 = vsel %vm1200, %v1187, %v1190
        %v1209 = vsel %vm1203, %v1196, 920167782
        %v1210 = vsel %vm1202, %v1193, %v1209
        %v1211 = vsel %vm1201, %v1208, %v1210
        %v1212 = vsel %vm1200, %v1190, %v1193
        %v1213 = vsel %vm1203, %v1199, 1326507024
        %v1214 = vsel %vm1202, %v1196, %v1213
        %v1215 = vsel %vm1201, %v1212, %v1214
        %v1216 = vshll.u32 %v1176, 8
        %v1217 = vmul.u32.u64.compose %v1216, %v1215
        %v1218 = vextract.low.u32 %v1217
        %v1219 = vextract.high.u32 %v1217
        %v1220 = vmul.u32.u64.compose %v1216, %v1211
        %v1221 = vextract.low.u32 %v1220
        %v1222 = vextract.high.u32 %v1220
        %v1223 = vmul.u32 %v1216, %v1207
        %v1224 = vadd.s32 %v1219, %v1221
        %vm1225 = vc.u32 %v1219, %v1221
        %v1226 = vadd.s32 %v1222, 1
        %v1227 = vsel %vm1225, %v1226, %v1222
        %v1228 = vadd.s32 %v1223, %v1227
        %v1229 = vadd.s32 %v1228, 536870912
        %v1230 = vshrl.u32 %v1229, 30
        %v1231 = vshll.u32 %v1230, 30
        %v1232 = vsub.s32 %v1228, %v1231
        %vm1233 = vcmp.lt.s32.totalorder %v1232, 0
        %v1234 = vsub.s32 0, %v1232
        %v1235 = vsel %vm1233, %v1234, %v1232
        %v1236 = vclz %v1235
        %v1237 = vsub.s32 %v1236, 2
        %vm1238 = vcmp.gt.s32.totalorder 0, %v1237
        %v1239 = vsel %vm1238, 0, %v1237
        %v1240 = vsub.s32 32, %v1239
        %v1241 = vshll.u32 %v1232, %v1239
        %v1242 = vshrl.u32 %v1224, %v1240
        %v1243 = vor.u32 %v1241, %v1242
        %v1244 = vsub.s32 4294967266, %v1239
        %v1245 = vadd.s32 %v1244, 127
        %v1246 = vshll.u32 %v1245, 23
        %v1247 = vor.u32 4788187, %v1246
        %v1248 = vand.u32 2147483647, %v1247
        %v1250 = vcvt.s32.f32 %v1243
        %v1251 = vmul.f32 %v1250, %v1248
        %v1252 = vxor.u32 %v1251, 2147483648
        %v1253 = vsel %vm1170, %v1252, %v1251
        %v1254 = vsub.s32 4, %v1230
        %v1255 = vsel %vm1170, %v1254, %v1230
        %v1256 = vsel %vm1169, %v431, %v1253
        %v1257 = vsel %vm1169, 0, %v1255
        %v1258 = vcosq.f32.pop %v1256
        %v1259 = vsinq.f32.pop %v1256
        %vm1260 = vweird.f32 %v431
        %v1261 = vadd.s32 %v1257, 3
        %v1262 = vand.u32 %v1261, 3
        %vm1263 = vcmp.lt.s32.totalorder %v1262, 2
        %vm1264 = vcmp.eq.s32.totalorder %v1262, 0
        %v1265 = vxor.u32 %v1259, 2147483648
        %v1266 = vsel %vm1264, %v1258, %v1265
        %vm1267 = vcmp.eq.s32.totalorder %v1262, 2
        %v1268 = vxor.u32 %v1258, 2147483648
        %v1269 = vsel %vm1267, %v1268, %v1259
        %v1270 = vsel %vm1263, %v1266, %v1269
        %v1271 = vsel %vm1260, nan, %v1270
        %v1272 = vand.u32 2147483647, %v432
        %vm1273 = vcmp.le.f32.partialorder %v1272, 0.7853982
        %vm1274 = vcmp.lt.s32.totalorder %v432, 0
        %v1275 = vand.u32 %v432, 2139095040
        %v1276 = vshrl.u32 %v1275, 23
        %v1277 = vsub.s32 %v1276, 127
        %v1278 = vand.u32 2147483647, %v432
        %v1279 = vand.u32 %v1278, 8388607
        %v1280 = vor.u32 %v1279, 8388608
        %v1281 = vsub.s32 0, %v1280
        %v1282 = vadd.s32 %v1277, 1
        %vm1283 = vcmp.gt.s32.totalorder %v1282, 0
        %v1284 = vsel %vm1283, %v1282, 0
        %v1285 = vshrl.u32 %v1284, 5
        %v1286 = vand.u32 %v1284, 31
        %v1287 = vsub.s32 32, %v1286
        %v1288 = vshrl.u32 683565275, %v1287
        %v1289 = vshll.u32 683565275, %v1286
        %v1290 = vshrl.u32 2475754826, %v1287
        %v1291 = vor.u32 %v1289, %v1290
        %v1292 = vshll.u32 2475754826, %v1286
        %v1293 = vshrl.u32 2131351028, %v1287
        %v1294 = vor.u32 %v1292, %v1293
        %v1295 = vshll.u32 2131351028, %v1286
        %v1296 = vshrl.u32 2102212464, %v1287
        %v1297 = vor.u32 %v1295, %v1296
        %v1298 = vshll.u32 2102212464, %v1286
        %v1299 = vshrl.u32 920167782, %v1287
        %v1300 = vor.u32 %v1298, %v1299
        %v1301 = vshll.u32 920167782, %v1286
        %v1302 = vshrl.u32 1326507024, %v1287
        %v1303 = vor.u32 %v1301, %v1302
        %vm1304 = vcmp.lt.s32.totalorder %v1285, 1
        %vm1305 = vcmp.lt.s32.totalorder %v1285, 2
        %vm1306 = vcmp.lt.s32.totalorder %v1285, 3
        %vm1307 = vcmp.lt.s32.totalorder %v1285, 4
        %v1308 = vsel %vm1304, %v1288, %v1291
        %v1309 = vsel %vm1307, %v1297, 2102212464
        %v1310 = vsel %vm1306, %v1294, %v1309
        %v1311 = vsel %vm1305, %v1308, %v1310
        %v1312 = vsel %vm1304, %v1291, %v1294
        %v1313 = vsel %vm1307, %v1300, 920167782
        %v1314 = vsel %vm1306, %v1297, %v1313
        %v1315 = vsel %vm1305, %v1312, %v1314
        %v1316 = vsel %vm1304, %v1294, %v1297
        %v1317 = vsel %vm1307, %v1303, 1326507024
        %v1318 = vsel %vm1306, %v1300, %v1317
        %v1319 = vsel %vm1305, %v1316, %v1318
        %v1320 = vshll.u32 %v1280, 8
        %v1321 = vmul.u32.u64.compose %v1320, %v1319
        %v1322 = vextract.low.u32 %v1321
        %v1323 = vextract.high.u32 %v1321
        %v1324 = vmul.u32.u64.compose %v1320, %v1315
        %v1325 = vextract.low.u32 %v1324
        %v1326 = vextract.high.u32 %v1324
        %v1327 = vmul.u32 %v1320, %v1311
        %v1328 = vadd.s32 %v1323, %v1325
        %vm1329 = vc.u32 %v1323, %v1325
        %v1330 = vadd.s32 %v1326, 1
        %v1331 = vsel %vm1329, %v1330, %v1326
        %v1332 = vadd.s32 %v1327, %v1331
        %v1333 = vadd.s32 %v1332, 536870912
        %v1334 = vshrl.u32 %v1333, 30
        %v1335 = vshll.u32 %v1334, 30
        %v1336 = vsub.s32 %v1332, %v1335
        %vm1337 = vcmp.lt.s32.totalorder %v1336, 0
        %v1338 = vsub.s32 0, %v1336
        %v1339 = vsel %vm1337, %v1338, %v1336
        %v1340 = vclz %v1339
        %v1341 = vsub.s32 %v1340, 2
        %vm1342 = vcmp.gt.s32.totalorder 0, %v1341
        %v1343 = vsel %vm1342, 0, %v1341
        %v1344 = vsub.s32 32, %v1343
        %v1345 = vshll.u32 %v1336, %v1343
        %v1346 = vshrl.u32 %v1328, %v1344
        %v1347 = vor.u32 %v1345, %v1346
        %v1348 = vsub.s32 4294967266, %v1343
        %v1349 = vadd.s32 %v1348, 127
        %v1350 = vshll.u32 %v1349, 23
        %v1351 = vor.u32 4788187, %v1350
        %v1352 = vand.u32 2147483647, %v1351
        %v1354 = vcvt.s32.f32 %v1347
        %v1355 = vmul.f32 %v1354, %v1352
        %v1356 = vxor.u32 %v1355, 2147483648
        %v1357 = vsel %vm1274, %v1356, %v1355
        %v1358 = vsub.s32 4, %v1334
        %v1359 = vsel %vm1274, %v1358, %v1334
        %v1360 = vsel %vm1273, %v432, %v1357
        %v1361 = vsel %vm1273, 0, %v1359
        %v1362 = vcosq.f32.pop %v1360
        %v1363 = vsinq.f32.pop %v1360
        %vm1364 = vweird.f32 %v432
        %v1365 = vadd.s32 %v1361, 3
        %v1366 = vand.u32 %v1365, 3
        %vm1367 = vcmp.lt.s32.totalorder %v1366, 2
        %vm1368 = vcmp.eq.s32.totalorder %v1366, 0
        %v1369 = vxor.u32 %v1363, 2147483648
        %v1370 = vsel %vm1368, %v1362, %v1369
        %vm1371 = vcmp.eq.s32.totalorder %v1366, 2
        %v1372 = vxor.u32 %v1362, 2147483648
        %v1373 = vsel %vm1371, %v1372, %v1363
        %v1374 = vsel %vm1367, %v1370, %v1373
        %v1375 = vsel %vm1364, nan, %v1374
        %v1376 = vand.u32 2147483647, %v433
        %vm1377 = vcmp.le.f32.partialorder %v1376, 0.7853982
        %vm1378 = vcmp.lt.s32.totalorder %v433, 0
        %v1379 = vand.u32 %v433, 2139095040
        %v1380 = vshrl.u32 %v1379, 23
        %v1381 = vsub.s32 %v1380, 127
        %v1382 = vand.u32 2147483647, %v433
        %v1383 = vand.u32 %v1382, 8388607
        %v1384 = vor.u32 %v1383, 8388608
        %v1385 = vsub.s32 0, %v1384
        %v1386 = vadd.s32 %v1381, 1
        %vm1387 = vcmp.gt.s32.totalorder %v1386, 0
        %v1388 = vsel %vm1387, %v1386, 0
        %v1389 = vshrl.u32 %v1388, 5
        %v1390 = vand.u32 %v1388, 31
        %v1391 = vsub.s32 32, %v1390
        %v1392 = vshrl.u32 683565275, %v1391
        %v1393 = vshll.u32 683565275, %v1390
        %v1394 = vshrl.u32 2475754826, %v1391
        %v1395 = vor.u32 %v1393, %v1394
        %v1396 = vshll.u32 2475754826, %v1390
        %v1397 = vshrl.u32 2131351028, %v1391
        %v1398 = vor.u32 %v1396, %v1397
        %v1399 = vshll.u32 2131351028, %v1390
        %v1400 = vshrl.u32 2102212464, %v1391
        %v1401 = vor.u32 %v1399, %v1400
        %v1402 = vshll.u32 2102212464, %v1390
        %v1403 = vshrl.u32 920167782, %v1391
        %v1404 = vor.u32 %v1402, %v1403
        %v1405 = vshll.u32 920167782, %v1390
        %v1406 = vshrl.u32 1326507024, %v1391
        %v1407 = vor.u32 %v1405, %v1406
        %vm1408 = vcmp.lt.s32.totalorder %v1389, 1
        %vm1409 = vcmp.lt.s32.totalorder %v1389, 2
        %vm1410 = vcmp.lt.s32.totalorder %v1389, 3
        %vm1411 = vcmp.lt.s32.totalorder %v1389, 4
        %v1412 = vsel %vm1408, %v1392, %v1395
        %v1413 = vsel %vm1411, %v1401, 2102212464
        %v1414 = vsel %vm1410, %v1398, %v1413
        %v1415 = vsel %vm1409, %v1412, %v1414
        %v1416 = vsel %vm1408, %v1395, %v1398
        %v1417 = vsel %vm1411, %v1404, 920167782
        %v1418 = vsel %vm1410, %v1401, %v1417
        %v1419 = vsel %vm1409, %v1416, %v1418
        %v1420 = vsel %vm1408, %v1398, %v1401
        %v1421 = vsel %vm1411, %v1407, 1326507024
        %v1422 = vsel %vm1410, %v1404, %v1421
        %v1423 = vsel %vm1409, %v1420, %v1422
        %v1424 = vshll.u32 %v1384, 8
        %v1425 = vmul.u32.u64.compose %v1424, %v1423
        %v1426 = vextract.low.u32 %v1425
        %v1427 = vextract.high.u32 %v1425
        %v1428 = vmul.u32.u64.compose %v1424, %v1419
        %v1429 = vextract.low.u32 %v1428
        %v1430 = vextract.high.u32 %v1428
        %v1431 = vmul.u32 %v1424, %v1415
        %v1432 = vadd.s32 %v1427, %v1429
        %vm1433 = vc.u32 %v1427, %v1429
        %v1434 = vadd.s32 %v1430, 1
        %v1435 = vsel %vm1433, %v1434, %v1430
        %v1436 = vadd.s32 %v1431, %v1435
        %v1437 = vadd.s32 %v1436, 536870912
        %v1438 = vshrl.u32 %v1437, 30
        %v1439 = vshll.u32 %v1438, 30
        %v1440 = vsub.s32 %v1436, %v1439
        %vm1441 = vcmp.lt.s32.totalorder %v1440, 0
        %v1442 = vsub.s32 0, %v1440
        %v1443 = vsel %vm1441, %v1442, %v1440
        %v1444 = vclz %v1443
        %v1445 = vsub.s32 %v1444, 2
        %vm1446 = vcmp.gt.s32.totalorder 0, %v1445
        %v1447 = vsel %vm1446, 0, %v1445
        %v1448 = vsub.s32 32, %v1447
        %v1449 = vshll.u32 %v1440, %v1447
        %v1450 = vshrl.u32 %v1432, %v1448
        %v1451 = vor.u32 %v1449, %v1450
        %v1452 = vsub.s32 4294967266, %v1447
        %v1453 = vadd.s32 %v1452, 127
        %v1454 = vshll.u32 %v1453, 23
        %v1455 = vor.u32 4788187, %v1454
        %v1456 = vand.u32 2147483647, %v1455
        %v1458 = vcvt.s32.f32 %v1451
        %v1459 = vmul.f32 %v1458, %v1456
        %v1460 = vxor.u32 %v1459, 2147483648
        %v1461 = vsel %vm1378, %v1460, %v1459
        %v1462 = vsub.s32 4, %v1438
        %v1463 = vsel %vm1378, %v1462, %v1438
        %v1464 = vsel %vm1377, %v433, %v1461
        %v1465 = vsel %vm1377, 0, %v1463
        %v1466 = vcosq.f32.pop %v1464
        %v1467 = vsinq.f32.pop %v1464
        %vm1468 = vweird.f32 %v433
        %v1469 = vadd.s32 %v1465, 3
        %v1470 = vand.u32 %v1469, 3
        %vm1471 = vcmp.lt.s32.totalorder %v1470, 2
        %vm1472 = vcmp.eq.s32.totalorder %v1470, 0
        %v1473 = vxor.u32 %v1467, 2147483648
        %v1474 = vsel %vm1472, %v1466, %v1473
        %vm1475 = vcmp.eq.s32.totalorder %v1470, 2
        %v1476 = vxor.u32 %v1466, 2147483648
        %v1477 = vsel %vm1475, %v1476, %v1467
        %v1478 = vsel %vm1471, %v1474, %v1477
        %v1479 = vsel %vm1468, nan, %v1478
        %v1480 = vand.u32 2147483647, %v434
        %vm1481 = vcmp.le.f32.partialorder %v1480, 0.7853982
        %vm1482 = vcmp.lt.s32.totalorder %v434, 0
        %v1483 = vand.u32 %v434, 2139095040
        %v1484 = vshrl.u32 %v1483, 23
        %v1485 = vsub.s32 %v1484, 127
        %v1486 = vand.u32 2147483647, %v434
        %v1487 = vand.u32 %v1486, 8388607
        %v1488 = vor.u32 %v1487, 8388608
        %v1489 = vsub.s32 0, %v1488
        %v1490 = vadd.s32 %v1485, 1
        %vm1491 = vcmp.gt.s32.totalorder %v1490, 0
        %v1492 = vsel %vm1491, %v1490, 0
        %v1493 = vshrl.u32 %v1492, 5
        %v1494 = vand.u32 %v1492, 31
        %v1495 = vsub.s32 32, %v1494
        %v1496 = vshrl.u32 683565275, %v1495
        %v1497 = vshll.u32 683565275, %v1494
        %v1498 = vshrl.u32 2475754826, %v1495
        %v1499 = vor.u32 %v1497, %v1498
        %v1500 = vshll.u32 2475754826, %v1494
        %v1501 = vshrl.u32 2131351028, %v1495
        %v1502 = vor.u32 %v1500, %v1501
        %v1503 = vshll.u32 2131351028, %v1494
        %v1504 = vshrl.u32 2102212464, %v1495
        %v1505 = vor.u32 %v1503, %v1504
        %v1506 = vshll.u32 2102212464, %v1494
        %v1507 = vshrl.u32 920167782, %v1495
        %v1508 = vor.u32 %v1506, %v1507
        %v1509 = vshll.u32 920167782, %v1494
        %v1510 = vshrl.u32 1326507024, %v1495
        %v1511 = vor.u32 %v1509, %v1510
        %vm1512 = vcmp.lt.s32.totalorder %v1493, 1
        %vm1513 = vcmp.lt.s32.totalorder %v1493, 2
        %vm1514 = vcmp.lt.s32.totalorder %v1493, 3
        %vm1515 = vcmp.lt.s32.totalorder %v1493, 4
        %v1516 = vsel %vm1512, %v1496, %v1499
        %v1517 = vsel %vm1515, %v1505, 2102212464
        %v1518 = vsel %vm1514, %v1502, %v1517
        %v1519 = vsel %vm1513, %v1516, %v1518
        %v1520 = vsel %vm1512, %v1499, %v1502
        %v1521 = vsel %vm1515, %v1508, 920167782
        %v1522 = vsel %vm1514, %v1505, %v1521
        %v1523 = vsel %vm1513, %v1520, %v1522
        %v1524 = vsel %vm1512, %v1502, %v1505
        %v1525 = vsel %vm1515, %v1511, 1326507024
        %v1526 = vsel %vm1514, %v1508, %v1525
        %v1527 = vsel %vm1513, %v1524, %v1526
        %v1528 = vshll.u32 %v1488, 8
        %v1529 = vmul.u32.u64.compose %v1528, %v1527
        %v1530 = vextract.low.u32 %v1529
        %v1531 = vextract.high.u32 %v1529
        %v1532 = vmul.u32.u64.compose %v1528, %v1523
        %v1533 = vextract.low.u32 %v1532
        %v1534 = vextract.high.u32 %v1532
        %v1535 = vmul.u32 %v1528, %v1519
        %v1536 = vadd.s32 %v1531, %v1533
        %vm1537 = vc.u32 %v1531, %v1533
        %v1538 = vadd.s32 %v1534, 1
        %v1539 = vsel %vm1537, %v1538, %v1534
        %v1540 = vadd.s32 %v1535, %v1539
        %v1541 = vadd.s32 %v1540, 536870912
        %v1542 = vshrl.u32 %v1541, 30
        %v1543 = vshll.u32 %v1542, 30
        %v1544 = vsub.s32 %v1540, %v1543
        %vm1545 = vcmp.lt.s32.totalorder %v1544, 0
        %v1546 = vsub.s32 0, %v1544
        %v1547 = vsel %vm1545, %v1546, %v1544
        %v1548 = vclz %v1547
        %v1549 = vsub.s32 %v1548, 2
        %vm1550 = vcmp.gt.s32.totalorder 0, %v1549
        %v1551 = vsel %vm1550, 0, %v1549
        %v1552 = vsub.s32 32, %v1551
        %v1553 = vshll.u32 %v1544, %v1551
        %v1554 = vshrl.u32 %v1536, %v1552
        %v1555 = vor.u32 %v1553, %v1554
        %v1556 = vsub.s32 4294967266, %v1551
        %v1557 = vadd.s32 %v1556, 127
        %v1558 = vshll.u32 %v1557, 23
        %v1559 = vor.u32 4788187, %v1558
        %v1560 = vand.u32 2147483647, %v1559
        %v1562 = vcvt.s32.f32 %v1555
        %v1563 = vmul.f32 %v1562, %v1560
        %v1564 = vxor.u32 %v1563, 2147483648
        %v1565 = vsel %vm1482, %v1564, %v1563
        %v1566 = vsub.s32 4, %v1542
        %v1567 = vsel %vm1482, %v1566, %v1542
        %v1568 = vsel %vm1481, %v434, %v1565
        %v1569 = vsel %vm1481, 0, %v1567
        %v1570 = vcosq.f32.pop %v1568
        %v1571 = vsinq.f32.pop %v1568
        %vm1572 = vweird.f32 %v434
        %v1573 = vadd.s32 %v1569, 3
        %v1574 = vand.u32 %v1573, 3
        %vm1575 = vcmp.lt.s32.totalorder %v1574, 2
        %vm1576 = vcmp.eq.s32.totalorder %v1574, 0
        %v1577 = vxor.u32 %v1571, 2147483648
        %v1578 = vsel %vm1576, %v1570, %v1577
        %vm1579 = vcmp.eq.s32.totalorder %v1574, 2
        %v1580 = vxor.u32 %v1570, 2147483648
        %v1581 = vsel %vm1579, %v1580, %v1571
        %v1582 = vsel %vm1575, %v1578, %v1581
        %v1583 = vsel %vm1572, nan, %v1582
        %v1584 = vand.u32 2147483647, %v435
        %vm1585 = vcmp.le.f32.partialorder %v1584, 0.7853982
        %vm1586 = vcmp.lt.s32.totalorder %v435, 0
        %v1587 = vand.u32 %v435, 2139095040
        %v1588 = vshrl.u32 %v1587, 23
        %v1589 = vsub.s32 %v1588, 127
        %v1590 = vand.u32 2147483647, %v435
        %v1591 = vand.u32 %v1590, 8388607
        %v1592 = vor.u32 %v1591, 8388608
        %v1593 = vsub.s32 0, %v1592
        %v1594 = vadd.s32 %v1589, 1
        %vm1595 = vcmp.gt.s32.totalorder %v1594, 0
        %v1596 = vsel %vm1595, %v1594, 0
        %v1597 = vshrl.u32 %v1596, 5
        %v1598 = vand.u32 %v1596, 31
        %v1599 = vsub.s32 32, %v1598
        %v1600 = vshrl.u32 683565275, %v1599
        %v1601 = vshll.u32 683565275, %v1598
        %v1602 = vshrl.u32 2475754826, %v1599
        %v1603 = vor.u32 %v1601, %v1602
        %v1604 = vshll.u32 2475754826, %v1598
        %v1605 = vshrl.u32 2131351028, %v1599
        %v1606 = vor.u32 %v1604, %v1605
        %v1607 = vshll.u32 2131351028, %v1598
        %v1608 = vshrl.u32 2102212464, %v1599
        %v1609 = vor.u32 %v1607, %v1608
        %v1610 = vshll.u32 2102212464, %v1598
        %v1611 = vshrl.u32 920167782, %v1599
        %v1612 = vor.u32 %v1610, %v1611
        %v1613 = vshll.u32 920167782, %v1598
        %v1614 = vshrl.u32 1326507024, %v1599
        %v1615 = vor.u32 %v1613, %v1614
        %vm1616 = vcmp.lt.s32.totalorder %v1597, 1
        %vm1617 = vcmp.lt.s32.totalorder %v1597, 2
        %vm1618 = vcmp.lt.s32.totalorder %v1597, 3
        %vm1619 = vcmp.lt.s32.totalorder %v1597, 4
        %v1620 = vsel %vm1616, %v1600, %v1603
        %v1621 = vsel %vm1619, %v1609, 2102212464
        %v1622 = vsel %vm1618, %v1606, %v1621
        %v1623 = vsel %vm1617, %v1620, %v1622
        %v1624 = vsel %vm1616, %v1603, %v1606
        %v1625 = vsel %vm1619, %v1612, 920167782
        %v1626 = vsel %vm1618, %v1609, %v1625
        %v1627 = vsel %vm1617, %v1624, %v1626
        %v1628 = vsel %vm1616, %v1606, %v1609
        %v1629 = vsel %vm1619, %v1615, 1326507024
        %v1630 = vsel %vm1618, %v1612, %v1629
        %v1631 = vsel %vm1617, %v1628, %v1630
        %v1632 = vshll.u32 %v1592, 8
        %v1633 = vmul.u32.u64.compose %v1632, %v1631
        %v1634 = vextract.low.u32 %v1633
        %v1635 = vextract.high.u32 %v1633
        %v1636 = vmul.u32.u64.compose %v1632, %v1627
        %v1637 = vextract.low.u32 %v1636
        %v1638 = vextract.high.u32 %v1636
        %v1639 = vmul.u32 %v1632, %v1623
        %v1640 = vadd.s32 %v1635, %v1637
        %vm1641 = vc.u32 %v1635, %v1637
        %v1642 = vadd.s32 %v1638, 1
        %v1643 = vsel %vm1641, %v1642, %v1638
        %v1644 = vadd.s32 %v1639, %v1643
        %v1645 = vadd.s32 %v1644, 536870912
        %v1646 = vshrl.u32 %v1645, 30
        %v1647 = vshll.u32 %v1646, 30
        %v1648 = vsub.s32 %v1644, %v1647
        %vm1649 = vcmp.lt.s32.totalorder %v1648, 0
        %v1650 = vsub.s32 0, %v1648
        %v1651 = vsel %vm1649, %v1650, %v1648
        %v1652 = vclz %v1651
        %v1653 = vsub.s32 %v1652, 2
        %vm1654 = vcmp.gt.s32.totalorder 0, %v1653
        %v1655 = vsel %vm1654, 0, %v1653
        %v1656 = vsub.s32 32, %v1655
        %v1657 = vshll.u32 %v1648, %v1655
        %v1658 = vshrl.u32 %v1640, %v1656
        %v1659 = vor.u32 %v1657, %v1658
        %v1660 = vsub.s32 4294967266, %v1655
        %v1661 = vadd.s32 %v1660, 127
        %v1662 = vshll.u32 %v1661, 23
        %v1663 = vor.u32 4788187, %v1662
        %v1664 = vand.u32 2147483647, %v1663
        %v1666 = vcvt.s32.f32 %v1659
        %v1667 = vmul.f32 %v1666, %v1664
        %v1668 = vxor.u32 %v1667, 2147483648
        %v1669 = vsel %vm1586, %v1668, %v1667
        %v1670 = vsub.s32 4, %v1646
        %v1671 = vsel %vm1586, %v1670, %v1646
        %v1672 = vsel %vm1585, %v435, %v1669
        %v1673 = vsel %vm1585, 0, %v1671
        %v1674 = vcosq.f32.pop %v1672
        %v1675 = vsinq.f32.pop %v1672
        %vm1676 = vweird.f32 %v435
        %v1677 = vadd.s32 %v1673, 3
        %v1678 = vand.u32 %v1677, 3
        %vm1679 = vcmp.lt.s32.totalorder %v1678, 2
        %vm1680 = vcmp.eq.s32.totalorder %v1678, 0
        %v1681 = vxor.u32 %v1675, 2147483648
        %v1682 = vsel %vm1680, %v1674, %v1681
        %vm1683 = vcmp.eq.s32.totalorder %v1678, 2
        %v1684 = vxor.u32 %v1674, 2147483648
        %v1685 = vsel %vm1683, %v1684, %v1675
        %v1686 = vsel %vm1679, %v1682, %v1685
        %v1687 = vsel %vm1676, nan, %v1686
        %v1688 = vand.u32 2147483647, %v436
        %vm1689 = vcmp.le.f32.partialorder %v1688, 0.7853982
        %vm1690 = vcmp.lt.s32.totalorder %v436, 0
        %v1691 = vand.u32 %v436, 2139095040
        %v1692 = vshrl.u32 %v1691, 23
        %v1693 = vsub.s32 %v1692, 127
        %v1694 = vand.u32 2147483647, %v436
        %v1695 = vand.u32 %v1694, 8388607
        %v1696 = vor.u32 %v1695, 8388608
        %v1697 = vsub.s32 0, %v1696
        %v1698 = vadd.s32 %v1693, 1
        %vm1699 = vcmp.gt.s32.totalorder %v1698, 0
        %v1700 = vsel %vm1699, %v1698, 0
        %v1701 = vshrl.u32 %v1700, 5
        %v1702 = vand.u32 %v1700, 31
        %v1703 = vsub.s32 32, %v1702
        %v1704 = vshrl.u32 683565275, %v1703
        %v1705 = vshll.u32 683565275, %v1702
        %v1706 = vshrl.u32 2475754826, %v1703
        %v1707 = vor.u32 %v1705, %v1706
        %v1708 = vshll.u32 2475754826, %v1702
        %v1709 = vshrl.u32 2131351028, %v1703
        %v1710 = vor.u32 %v1708, %v1709
        %v1711 = vshll.u32 2131351028, %v1702
        %v1712 = vshrl.u32 2102212464, %v1703
        %v1713 = vor.u32 %v1711, %v1712
        %v1714 = vshll.u32 2102212464, %v1702
        %v1715 = vshrl.u32 920167782, %v1703
        %v1716 = vor.u32 %v1714, %v1715
        %v1717 = vshll.u32 920167782, %v1702
        %v1718 = vshrl.u32 1326507024, %v1703
        %v1719 = vor.u32 %v1717, %v1718
        %vm1720 = vcmp.lt.s32.totalorder %v1701, 1
        %vm1721 = vcmp.lt.s32.totalorder %v1701, 2
        %vm1722 = vcmp.lt.s32.totalorder %v1701, 3
        %vm1723 = vcmp.lt.s32.totalorder %v1701, 4
        %v1724 = vsel %vm1720, %v1704, %v1707
        %v1725 = vsel %vm1723, %v1713, 2102212464
        %v1726 = vsel %vm1722, %v1710, %v1725
        %v1727 = vsel %vm1721, %v1724, %v1726
        %v1728 = vsel %vm1720, %v1707, %v1710
        %v1729 = vsel %vm1723, %v1716, 920167782
        %v1730 = vsel %vm1722, %v1713, %v1729
        %v1731 = vsel %vm1721, %v1728, %v1730
        %v1732 = vsel %vm1720, %v1710, %v1713
        %v1733 = vsel %vm1723, %v1719, 1326507024
        %v1734 = vsel %vm1722, %v1716, %v1733
        %v1735 = vsel %vm1721, %v1732, %v1734
        %v1736 = vshll.u32 %v1696, 8
        %v1737 = vmul.u32.u64.compose %v1736, %v1735
        %v1738 = vextract.low.u32 %v1737
        %v1739 = vextract.high.u32 %v1737
        %v1740 = vmul.u32.u64.compose %v1736, %v1731
        %v1741 = vextract.low.u32 %v1740
        %v1742 = vextract.high.u32 %v1740
        %v1743 = vmul.u32 %v1736, %v1727
        %v1744 = vadd.s32 %v1739, %v1741
        %vm1745 = vc.u32 %v1739, %v1741
        %v1746 = vadd.s32 %v1742, 1
        %v1747 = vsel %vm1745, %v1746, %v1742
        %v1748 = vadd.s32 %v1743, %v1747
        %v1749 = vadd.s32 %v1748, 536870912
        %v1750 = vshrl.u32 %v1749, 30
        %v1751 = vshll.u32 %v1750, 30
        %v1752 = vsub.s32 %v1748, %v1751
        %vm1753 = vcmp.lt.s32.totalorder %v1752, 0
        %v1754 = vsub.s32 0, %v1752
        %v1755 = vsel %vm1753, %v1754, %v1752
        %v1756 = vclz %v1755
        %v1757 = vsub.s32 %v1756, 2
        %vm1758 = vcmp.gt.s32.totalorder 0, %v1757
        %v1759 = vsel %vm1758, 0, %v1757
        %v1760 = vsub.s32 32, %v1759
        %v1761 = vshll.u32 %v1752, %v1759
        %v1762 = vshrl.u32 %v1744, %v1760
        %v1763 = vor.u32 %v1761, %v1762
        %v1764 = vsub.s32 4294967266, %v1759
        %v1765 = vadd.s32 %v1764, 127
        %v1766 = vshll.u32 %v1765, 23
        %v1767 = vor.u32 4788187, %v1766
        %v1768 = vand.u32 2147483647, %v1767
        %v1770 = vcvt.s32.f32 %v1763
        %v1771 = vmul.f32 %v1770, %v1768
        %v1772 = vxor.u32 %v1771, 2147483648
        %v1773 = vsel %vm1690, %v1772, %v1771
        %v1774 = vsub.s32 4, %v1750
        %v1775 = vsel %vm1690, %v1774, %v1750
        %v1776 = vsel %vm1689, %v436, %v1773
        %v1777 = vsel %vm1689, 0, %v1775
        %v1778 = vcosq.f32.pop %v1776
        %v1779 = vsinq.f32.pop %v1776
        %vm1780 = vweird.f32 %v436
        %v1781 = vadd.s32 %v1777, 3
        %v1782 = vand.u32 %v1781, 3
        %vm1783 = vcmp.lt.s32.totalorder %v1782, 2
        %vm1784 = vcmp.eq.s32.totalorder %v1782, 0
        %v1785 = vxor.u32 %v1779, 2147483648
        %v1786 = vsel %vm1784, %v1778, %v1785
        %vm1787 = vcmp.eq.s32.totalorder %v1782, 2
        %v1788 = vxor.u32 %v1778, 2147483648
        %v1789 = vsel %vm1787, %v1788, %v1779
        %v1790 = vsel %vm1783, %v1786, %v1789
        %v1791 = vsel %vm1780, nan, %v1790
        %v1792 = vand.u32 2147483647, %v437
        %vm1793 = vcmp.le.f32.partialorder %v1792, 0.7853982
        %vm1794 = vcmp.lt.s32.totalorder %v437, 0
        %v1795 = vand.u32 %v437, 2139095040
        %v1796 = vshrl.u32 %v1795, 23
        %v1797 = vsub.s32 %v1796, 127
        %v1798 = vand.u32 2147483647, %v437
        %v1799 = vand.u32 %v1798, 8388607
        %v1800 = vor.u32 %v1799, 8388608
        %v1801 = vsub.s32 0, %v1800
        %v1802 = vadd.s32 %v1797, 1
        %vm1803 = vcmp.gt.s32.totalorder %v1802, 0
        %v1804 = vsel %vm1803, %v1802, 0
        %v1805 = vshrl.u32 %v1804, 5
        %v1806 = vand.u32 %v1804, 31
        %v1807 = vsub.s32 32, %v1806
        %v1808 = vshrl.u32 683565275, %v1807
        %v1809 = vshll.u32 683565275, %v1806
        %v1810 = vshrl.u32 2475754826, %v1807
        %v1811 = vor.u32 %v1809, %v1810
        %v1812 = vshll.u32 2475754826, %v1806
        %v1813 = vshrl.u32 2131351028, %v1807
        %v1814 = vor.u32 %v1812, %v1813
        %v1815 = vshll.u32 2131351028, %v1806
        %v1816 = vshrl.u32 2102212464, %v1807
        %v1817 = vor.u32 %v1815, %v1816
        %v1818 = vshll.u32 2102212464, %v1806
        %v1819 = vshrl.u32 920167782, %v1807
        %v1820 = vor.u32 %v1818, %v1819
        %v1821 = vshll.u32 920167782, %v1806
        %v1822 = vshrl.u32 1326507024, %v1807
        %v1823 = vor.u32 %v1821, %v1822
        %vm1824 = vcmp.lt.s32.totalorder %v1805, 1
        %vm1825 = vcmp.lt.s32.totalorder %v1805, 2
        %vm1826 = vcmp.lt.s32.totalorder %v1805, 3
        %vm1827 = vcmp.lt.s32.totalorder %v1805, 4
        %v1828 = vsel %vm1824, %v1808, %v1811
        %v1829 = vsel %vm1827, %v1817, 2102212464
        %v1830 = vsel %vm1826, %v1814, %v1829
        %v1831 = vsel %vm1825, %v1828, %v1830
        %v1832 = vsel %vm1824, %v1811, %v1814
        %v1833 = vsel %vm1827, %v1820, 920167782
        %v1834 = vsel %vm1826, %v1817, %v1833
        %v1835 = vsel %vm1825, %v1832, %v1834
        %v1836 = vsel %vm1824, %v1814, %v1817
        %v1837 = vsel %vm1827, %v1823, 1326507024
        %v1838 = vsel %vm1826, %v1820, %v1837
        %v1839 = vsel %vm1825, %v1836, %v1838
        %v1840 = vshll.u32 %v1800, 8
        %v1841 = vmul.u32.u64.compose %v1840, %v1839
        %v1842 = vextract.low.u32 %v1841
        %v1843 = vextract.high.u32 %v1841
        %v1844 = vmul.u32.u64.compose %v1840, %v1835
        %v1845 = vextract.low.u32 %v1844
        %v1846 = vextract.high.u32 %v1844
        %v1847 = vmul.u32 %v1840, %v1831
        %v1848 = vadd.s32 %v1843, %v1845
        %vm1849 = vc.u32 %v1843, %v1845
        %v1850 = vadd.s32 %v1846, 1
        %v1851 = vsel %vm1849, %v1850, %v1846
        %v1852 = vadd.s32 %v1847, %v1851
        %v1853 = vadd.s32 %v1852, 536870912
        %v1854 = vshrl.u32 %v1853, 30
        %v1855 = vshll.u32 %v1854, 30
        %v1856 = vsub.s32 %v1852, %v1855
        %vm1857 = vcmp.lt.s32.totalorder %v1856, 0
        %v1858 = vsub.s32 0, %v1856
        %v1859 = vsel %vm1857, %v1858, %v1856
        %v1860 = vclz %v1859
        %v1861 = vsub.s32 %v1860, 2
        %vm1862 = vcmp.gt.s32.totalorder 0, %v1861
        %v1863 = vsel %vm1862, 0, %v1861
        %v1864 = vsub.s32 32, %v1863
        %v1865 = vshll.u32 %v1856, %v1863
        %v1866 = vshrl.u32 %v1848, %v1864
        %v1867 = vor.u32 %v1865, %v1866
        %v1868 = vsub.s32 4294967266, %v1863
        %v1869 = vadd.s32 %v1868, 127
        %v1870 = vshll.u32 %v1869, 23
        %v1871 = vor.u32 4788187, %v1870
        %v1872 = vand.u32 2147483647, %v1871
        %v1874 = vcvt.s32.f32 %v1867
        %v1875 = vmul.f32 %v1874, %v1872
        %v1876 = vxor.u32 %v1875, 2147483648
        %v1877 = vsel %vm1794, %v1876, %v1875
        %v1878 = vsub.s32 4, %v1854
        %v1879 = vsel %vm1794, %v1878, %v1854
        %v1880 = vsel %vm1793, %v437, %v1877
        %v1881 = vsel %vm1793, 0, %v1879
        %v1882 = vcosq.f32.pop %v1880
        %v1883 = vsinq.f32.pop %v1880
        %vm1884 = vweird.f32 %v437
        %v1885 = vadd.s32 %v1881, 3
        %v1886 = vand.u32 %v1885, 3
        %vm1887 = vcmp.lt.s32.totalorder %v1886, 2
        %vm1888 = vcmp.eq.s32.totalorder %v1886, 0
        %v1889 = vxor.u32 %v1883, 2147483648
        %v1890 = vsel %vm1888, %v1882, %v1889
        %vm1891 = vcmp.eq.s32.totalorder %v1886, 2
        %v1892 = vxor.u32 %v1882, 2147483648
        %v1893 = vsel %vm1891, %v1892, %v1883
        %v1894 = vsel %vm1887, %v1890, %v1893
        %v1895 = vsel %vm1884, nan, %v1894
        %v1896 = vand.u32 2147483647, %v438
        %vm1897 = vcmp.le.f32.partialorder %v1896, 0.7853982
        %vm1898 = vcmp.lt.s32.totalorder %v438, 0
        %v1899 = vand.u32 %v438, 2139095040
        %v1900 = vshrl.u32 %v1899, 23
        %v1901 = vsub.s32 %v1900, 127
        %v1902 = vand.u32 2147483647, %v438
        %v1903 = vand.u32 %v1902, 8388607
        %v1904 = vor.u32 %v1903, 8388608
        %v1905 = vsub.s32 0, %v1904
        %v1906 = vadd.s32 %v1901, 1
        %vm1907 = vcmp.gt.s32.totalorder %v1906, 0
        %v1908 = vsel %vm1907, %v1906, 0
        %v1909 = vshrl.u32 %v1908, 5
        %v1910 = vand.u32 %v1908, 31
        %v1911 = vsub.s32 32, %v1910
        %v1912 = vshrl.u32 683565275, %v1911
        %v1913 = vshll.u32 683565275, %v1910
        %v1914 = vshrl.u32 2475754826, %v1911
        %v1915 = vor.u32 %v1913, %v1914
        %v1916 = vshll.u32 2475754826, %v1910
        %v1917 = vshrl.u32 2131351028, %v1911
        %v1918 = vor.u32 %v1916, %v1917
        %v1919 = vshll.u32 2131351028, %v1910
        %v1920 = vshrl.u32 2102212464, %v1911
        %v1921 = vor.u32 %v1919, %v1920
        %v1922 = vshll.u32 2102212464, %v1910
        %v1923 = vshrl.u32 920167782, %v1911
        %v1924 = vor.u32 %v1922, %v1923
        %v1925 = vshll.u32 920167782, %v1910
        %v1926 = vshrl.u32 1326507024, %v1911
        %v1927 = vor.u32 %v1925, %v1926
        %vm1928 = vcmp.lt.s32.totalorder %v1909, 1
        %vm1929 = vcmp.lt.s32.totalorder %v1909, 2
        %vm1930 = vcmp.lt.s32.totalorder %v1909, 3
        %vm1931 = vcmp.lt.s32.totalorder %v1909, 4
        %v1932 = vsel %vm1928, %v1912, %v1915
        %v1933 = vsel %vm1931, %v1921, 2102212464
        %v1934 = vsel %vm1930, %v1918, %v1933
        %v1935 = vsel %vm1929, %v1932, %v1934
        %v1936 = vsel %vm1928, %v1915, %v1918
        %v1937 = vsel %vm1931, %v1924, 920167782
        %v1938 = vsel %vm1930, %v1921, %v1937
        %v1939 = vsel %vm1929, %v1936, %v1938
        %v1940 = vsel %vm1928, %v1918, %v1921
        %v1941 = vsel %vm1931, %v1927, 1326507024
        %v1942 = vsel %vm1930, %v1924, %v1941
        %v1943 = vsel %vm1929, %v1940, %v1942
        %v1944 = vshll.u32 %v1904, 8
        %v1945 = vmul.u32.u64.compose %v1944, %v1943
        %v1946 = vextract.low.u32 %v1945
        %v1947 = vextract.high.u32 %v1945
        %v1948 = vmul.u32.u64.compose %v1944, %v1939
        %v1949 = vextract.low.u32 %v1948
        %v1950 = vextract.high.u32 %v1948
        %v1951 = vmul.u32 %v1944, %v1935
        %v1952 = vadd.s32 %v1947, %v1949
        %vm1953 = vc.u32 %v1947, %v1949
        %v1954 = vadd.s32 %v1950, 1
        %v1955 = vsel %vm1953, %v1954, %v1950
        %v1956 = vadd.s32 %v1951, %v1955
        %v1957 = vadd.s32 %v1956, 536870912
        %v1958 = vshrl.u32 %v1957, 30
        %v1959 = vshll.u32 %v1958, 30
        %v1960 = vsub.s32 %v1956, %v1959
        %vm1961 = vcmp.lt.s32.totalorder %v1960, 0
        %v1962 = vsub.s32 0, %v1960
        %v1963 = vsel %vm1961, %v1962, %v1960
        %v1964 = vclz %v1963
        %v1965 = vsub.s32 %v1964, 2
        %vm1966 = vcmp.gt.s32.totalorder 0, %v1965
        %v1967 = vsel %vm1966, 0, %v1965
        %v1968 = vsub.s32 32, %v1967
        %v1969 = vshll.u32 %v1960, %v1967
        %v1970 = vshrl.u32 %v1952, %v1968
        %v1971 = vor.u32 %v1969, %v1970
        %v1972 = vsub.s32 4294967266, %v1967
        %v1973 = vadd.s32 %v1972, 127
        %v1974 = vshll.u32 %v1973, 23
        %v1975 = vor.u32 4788187, %v1974
        %v1976 = vand.u32 2147483647, %v1975
        %v1978 = vcvt.s32.f32 %v1971
        %v1979 = vmul.f32 %v1978, %v1976
        %v1980 = vxor.u32 %v1979, 2147483648
        %v1981 = vsel %vm1898, %v1980, %v1979
        %v1982 = vsub.s32 4, %v1958
        %v1983 = vsel %vm1898, %v1982, %v1958
        %v1984 = vsel %vm1897, %v438, %v1981
        %v1985 = vsel %vm1897, 0, %v1983
        %v1986 = vcosq.f32.pop %v1984
        %v1987 = vsinq.f32.pop %v1984
        %vm1988 = vweird.f32 %v438
        %v1989 = vadd.s32 %v1985, 3
        %v1990 = vand.u32 %v1989, 3
        %vm1991 = vcmp.lt.s32.totalorder %v1990, 2
        %vm1992 = vcmp.eq.s32.totalorder %v1990, 0
        %v1993 = vxor.u32 %v1987, 2147483648
        %v1994 = vsel %vm1992, %v1986, %v1993
        %vm1995 = vcmp.eq.s32.totalorder %v1990, 2
        %v1996 = vxor.u32 %v1986, 2147483648
        %v1997 = vsel %vm1995, %v1996, %v1987
        %v1998 = vsel %vm1991, %v1994, %v1997
        %v1999 = vsel %vm1988, nan, %v1998
        %v2000 = vand.u32 2147483647, %v439
        %vm2001 = vcmp.le.f32.partialorder %v2000, 0.7853982
        %vm2002 = vcmp.lt.s32.totalorder %v439, 0
        %v2003 = vand.u32 %v439, 2139095040
        %v2004 = vshrl.u32 %v2003, 23
        %v2005 = vsub.s32 %v2004, 127
        %v2006 = vand.u32 2147483647, %v439
        %v2007 = vand.u32 %v2006, 8388607
        %v2008 = vor.u32 %v2007, 8388608
        %v2009 = vsub.s32 0, %v2008
        %v2010 = vadd.s32 %v2005, 1
        %vm2011 = vcmp.gt.s32.totalorder %v2010, 0
        %v2012 = vsel %vm2011, %v2010, 0
        %v2013 = vshrl.u32 %v2012, 5
        %v2014 = vand.u32 %v2012, 31
        %v2015 = vsub.s32 32, %v2014
        %v2016 = vshrl.u32 683565275, %v2015
        %v2017 = vshll.u32 683565275, %v2014
        %v2018 = vshrl.u32 2475754826, %v2015
        %v2019 = vor.u32 %v2017, %v2018
        %v2020 = vshll.u32 2475754826, %v2014
        %v2021 = vshrl.u32 2131351028, %v2015
        %v2022 = vor.u32 %v2020, %v2021
        %v2023 = vshll.u32 2131351028, %v2014
        %v2024 = vshrl.u32 2102212464, %v2015
        %v2025 = vor.u32 %v2023, %v2024
        %v2026 = vshll.u32 2102212464, %v2014
        %v2027 = vshrl.u32 920167782, %v2015
        %v2028 = vor.u32 %v2026, %v2027
        %v2029 = vshll.u32 920167782, %v2014
        %v2030 = vshrl.u32 1326507024, %v2015
        %v2031 = vor.u32 %v2029, %v2030
        %vm2032 = vcmp.lt.s32.totalorder %v2013, 1
        %vm2033 = vcmp.lt.s32.totalorder %v2013, 2
        %vm2034 = vcmp.lt.s32.totalorder %v2013, 3
        %vm2035 = vcmp.lt.s32.totalorder %v2013, 4
        %v2036 = vsel %vm2032, %v2016, %v2019
        %v2037 = vsel %vm2035, %v2025, 2102212464
        %v2038 = vsel %vm2034, %v2022, %v2037
        %v2039 = vsel %vm2033, %v2036, %v2038
        %v2040 = vsel %vm2032, %v2019, %v2022
        %v2041 = vsel %vm2035, %v2028, 920167782
        %v2042 = vsel %vm2034, %v2025, %v2041
        %v2043 = vsel %vm2033, %v2040, %v2042
        %v2044 = vsel %vm2032, %v2022, %v2025
        %v2045 = vsel %vm2035, %v2031, 1326507024
        %v2046 = vsel %vm2034, %v2028, %v2045
        %v2047 = vsel %vm2033, %v2044, %v2046
        %v2048 = vshll.u32 %v2008, 8
        %v2049 = vmul.u32.u64.compose %v2048, %v2047
        %v2050 = vextract.low.u32 %v2049
        %v2051 = vextract.high.u32 %v2049
        %v2052 = vmul.u32.u64.compose %v2048, %v2043
        %v2053 = vextract.low.u32 %v2052
        %v2054 = vextract.high.u32 %v2052
        %v2055 = vmul.u32 %v2048, %v2039
        %v2056 = vadd.s32 %v2051, %v2053
        %vm2057 = vc.u32 %v2051, %v2053
        %v2058 = vadd.s32 %v2054, 1
        %v2059 = vsel %vm2057, %v2058, %v2054
        %v2060 = vadd.s32 %v2055, %v2059
        %v2061 = vadd.s32 %v2060, 536870912
        %v2062 = vshrl.u32 %v2061, 30
        %v2063 = vshll.u32 %v2062, 30
        %v2064 = vsub.s32 %v2060, %v2063
        %vm2065 = vcmp.lt.s32.totalorder %v2064, 0
        %v2066 = vsub.s32 0, %v2064
        %v2067 = vsel %vm2065, %v2066, %v2064
        %v2068 = vclz %v2067
        %v2069 = vsub.s32 %v2068, 2
        %vm2070 = vcmp.gt.s32.totalorder 0, %v2069
        %v2071 = vsel %vm2070, 0, %v2069
        %v2072 = vsub.s32 32, %v2071
        %v2073 = vshll.u32 %v2064, %v2071
        %v2074 = vshrl.u32 %v2056, %v2072
        %v2075 = vor.u32 %v2073, %v2074
        %v2076 = vsub.s32 4294967266, %v2071
        %v2077 = vadd.s32 %v2076, 127
        %v2078 = vshll.u32 %v2077, 23
        %v2079 = vor.u32 4788187, %v2078
        %v2080 = vand.u32 2147483647, %v2079
        %v2082 = vcvt.s32.f32 %v2075
        %v2083 = vmul.f32 %v2082, %v2080
        %v2084 = vxor.u32 %v2083, 2147483648
        %v2085 = vsel %vm2002, %v2084, %v2083
        %v2086 = vsub.s32 4, %v2062
        %v2087 = vsel %vm2002, %v2086, %v2062
        %v2088 = vsel %vm2001, %v439, %v2085
        %v2089 = vsel %vm2001, 0, %v2087
        %v2090 = vcosq.f32.pop %v2088
        %v2091 = vsinq.f32.pop %v2088
        %vm2092 = vweird.f32 %v439
        %v2093 = vadd.s32 %v2089, 3
        %v2094 = vand.u32 %v2093, 3
        %vm2095 = vcmp.lt.s32.totalorder %v2094, 2
        %vm2096 = vcmp.eq.s32.totalorder %v2094, 0
        %v2097 = vxor.u32 %v2091, 2147483648
        %v2098 = vsel %vm2096, %v2090, %v2097
        %vm2099 = vcmp.eq.s32.totalorder %v2094, 2
        %v2100 = vxor.u32 %v2090, 2147483648
        %v2101 = vsel %vm2099, %v2100, %v2091
        %v2102 = vsel %vm2095, %v2098, %v2101
        %v2103 = vsel %vm2092, nan, %v2102
        %v2104 = vld [vmem:[%s2] sm:$0x1]
        %v2106 = vlaneseq
        %v2107 = vshrl.u32 %v2106, 7
        %v2108 = vsub.s32 0, %v2107
        %v2109 = vrot.slane %v2104, %v2108
        %v2111 = vmul.f32 %v543, %v2109
        %v2112 = vmul.f32 %v647, %v2109
        %v2113 = vmul.f32 %v751, %v2109
        %v2114 = vmul.f32 %v855, %v2109
        %v2115 = vmul.f32 %v959, %v2109
        %v2116 = vmul.f32 %v1063, %v2109
        %v2117 = vmul.f32 %v1167, %v2109
        %v2118 = vmul.f32 %v1271, %v2109
        %v2119 = vmul.f32 %v1375, %v2109
        %v2120 = vmul.f32 %v1479, %v2109
        %v2121 = vmul.f32 %v1583, %v2109
        %v2122 = vmul.f32 %v1687, %v2109
        %v2123 = vmul.f32 %v1791, %v2109
        %v2124 = vmul.f32 %v1895, %v2109
        %v2125 = vmul.f32 %v1999, %v2109
        %v2126 = vmul.f32 %v2103, %v2109
        %2127 = vst [vmem:[%s191] sm:$0xff] %v2111
        %2128 = vst [vmem:[%s191 + $0x8] sm:$0xff] %v2112
        %2129 = vst [vmem:[%s191 + $0x10] sm:$0xff] %v2113
        %2130 = vst [vmem:[%s191 + $0x18] sm:$0xff] %v2114
        %2131 = vst [vmem:[%s191 + $0x20] sm:$0xff] %v2115
        %2132 = vst [vmem:[%s191 + $0x28] sm:$0xff] %v2116
        %2133 = vst [vmem:[%s191 + $0x30] sm:$0xff] %v2117
        %2134 = vst [vmem:[%s191 + $0x38] sm:$0xff] %v2118
        %2135 = vst [vmem:[%s191 + $0x40] sm:$0xff] %v2119
        %2136 = vst [vmem:[%s191 + $0x48] sm:$0xff] %v2120
        %2137 = vst [vmem:[%s191 + $0x50] sm:$0xff] %v2121
        %2138 = vst [vmem:[%s191 + $0x58] sm:$0xff] %v2122
        %2139 = vst [vmem:[%s191 + $0x60] sm:$0xff] %v2123
        %2140 = vst [vmem:[%s191 + $0x68] sm:$0xff] %v2124
        %2141 = vst [vmem:[%s191 + $0x70] sm:$0xff] %v2125
        %2142 = vst [vmem:[%s191 + $0x78] sm:$0xff] %v2126
        %s2143 = sand.u32 %s115, 1
        %s2144 = scalar_lea.sflag [#allocation3], %s2143
        %s2145 = sand.u32 %s115, 1
        %s2146 = smul.addr %s2145, 128
        %s2147 = scalar_lea.vmem [#allocation2], %s2146
        // Predicated region
        $region37: #{fourier_encoder.1} parent=35 // pred_check
          %p2148 = pneg %p125
        $region38: #{fourier_encoder.1} parent=35 // pred_check_branch
          %2150 = sbr.rel (%p2148) target = $region40
        $region39: #{fourier_encoder.1} parent=35 // pred_region
          %s2151 = smul.u32 16, %s18
          %s2153 = ssub.s32 2048, 2048
          %2154 = vsyncadd %s2144, %s2153
          %s2155 = smul.addr %s2151, 128
          %s2156 = scalar_lea.hbm %s4, %s2155
          %s2157 = sshll.u32 %s2147, 4
          %s2158 = int_to_ptr.vmem [resolvable:$true] %s2157
          %2163 = dma.vmem_to_hbm [thread:$0]  %s2158, 2048, %s2156, %s2144, 128, 128, 8
        $region40: #{fourier_encoder.1} parent=35 // pred_fallthru
          _
      $region36: #{fourier_encoder.1} parent=5 // pred_fallthru
        _
      %p2164 = scmp.le.s32.totalorder 2, %s13
      // Predicated region
      $region41: #{fourier_encoder.1} parent=5 // pred_check
        %p2165 = pneg %p2164
      $region42: #{fourier_encoder.1} parent=5 // pred_check_branch
        %2167 = sbr.rel (%p2165) target = $region44
      $region43: #{fourier_encoder.1} parent=5 // pred_region
        %s2168 = ssub.s32 %s13, 2
        // Predicated region
        $region45: #{fourier_encoder.1} parent=43 // pred_check
          %p2169 = pneg %p131
        $region46: #{fourier_encoder.1} parent=43 // pred_check_branch
          %2171 = sbr.rel (%p2169) target = $region48
        $region47: #{fourier_encoder.1} parent=43 // pred_region
          %s2172 = sand.u32 %s116, 1
          %s2173 = scalar_lea.sflag [#allocation3], %s2172
          %s2174 = sand.u32 %s116, 1
          %s2175 = smul.addr %s2174, 128
          %s2176 = scalar_lea.vmem [#allocation2], %s2175
          %2177 = dma.done %s2173, 2048
        $region48: #{fourier_encoder.1} parent=43 // pred_fallthru
          _
      $region44: #{fourier_encoder.1} parent=5 // pred_fallthru
        _
    $region6: #{fourier_encoder.1} parent=1 // loop_footer
      %s17 = sadd.s32 1, %s13
    $region7: #{fourier_encoder.1} parent=1 // loop_footer_branch
      %12 = sbr.rel target = $region3
    $region8: #{fourier_encoder.1} parent=1 // loop_exit
      _
    %2178 = vsyncpa [#allocation3], 1
    %s2179 = scalar_lea.sflag [#allocation3], 1
    %2180 = vsyncpa %s2179, 1

</llo_original>
